<compile_context>
chip_gen: v5e
topology: v5e:2x2
jax: 0.10.0
libtpu: 0.0.40
codegen_flags: <defaults>
</compile_context>

<pallas_src>
import jax
import jax.numpy as jnp
from jax import lax
from jax.experimental import pallas as pl
from jax.experimental.pallas import tpu as pltpu


# --------------------------------------------------------------------------- kernel

def rgcn_kernel(a_ref, y_ref, h0_ref, o_ref, deg_ref, msg_ref):
    """Grid = (dst tile i, relation r, src tile k). Output block resident over (r,k)."""
    r = pl.program_id(1)
    k = pl.program_id(2)
    nk = pl.num_programs(2)

    @pl.when(jnp.logical_and(r == 0, k == 0))
    def _():
        # self-loop message + bias initialize the accumulator (== output block)
        o_ref[...] = h0_ref[...]

    @pl.when(k == 0)
    def _():
        deg_ref[...] = jnp.zeros_like(deg_ref)
        msg_ref[...] = jnp.zeros_like(msg_ref)

    a = a_ref[...].astype(jnp.bfloat16)        # int8 {0,1} -> bf16 (exact), VPU cast
    # partial in-degree for this (relation, src tile): f32 accumulation, no f32 copy
    deg_ref[...] += jnp.sum(a, axis=-1, keepdims=True, dtype=jnp.float32)
    # message passing against the VMEM-resident projected features Y_r (bf16, f32 acc)
    y_rk = y_ref[r * nk + k]                   # (tk, F_out) slab of resident Y
    msg_ref[...] += jnp.dot(a, y_rk, preferred_element_type=jnp.float32)

    @pl.when(k == nk - 1)
    def _():
        # norm='right': divide by in-degree, clamped at 1 (zero-degree safe).
        inv_deg = 1.0 / jnp.maximum(deg_ref[...], 1.0)
        o_ref[...] += msg_ref[...] * inv_deg   # sum over relations

    @pl.when(jnp.logical_and(r == pl.num_programs(1) - 1, k == nk - 1))
    def _():
        o_ref[...] = jnp.maximum(o_ref[...], 0.0)   # activation = ReLU
        # TODO(synk): nn.Dropout(p=0.0) is the identity (eval semantics); omitted.


# ------------------------------------------------------------------------- wrapper

def _vmem_capacity_bytes():
    try:
        return int(pltpu.get_tpu_info().vmem_capacity_bytes)
    except Exception:
        return 64 * 1024 * 1024        # conservative (v7x-sized) fallback


def _choose_tiles(N, R, F_out, vmem_budget):
    """Biggest (tm, tk) whose double-buffered working set fits the VMEM budget."""
    def working_set(tm, tk):
        a = 2 * tm * tk * 1                    # int8 A tile, double-buffered
        y = 2 * R * N * F_out * 2              # resident Y (x2: pipeline buffers)
        h0 = 2 * tm * F_out * 4
        out = 2 * tm * F_out * 4
        scratch = tm * 128 * 4 + tm * F_out * 4  # deg (lane-padded) + msg
        return a + y + h0 + out + scratch

    tm_cands = [c for c in (1024, 512, 256, 128) if c <= N and N % c == 0] or [N]
    tk_cands = [N] + [c for c in (4096, 2048, 1024, 512, 256, 128)
                      if c < N and N % c == 0]
    for tm in tm_cands:
        for tk in tk_cands:
            if working_set(tm, tk) <= vmem_budget:
                return tm, tk
    # TODO(synk): for graphs so large that even resident Y overflows VMEM, Y would
    # need per-relation streaming again; not needed at these scales.
    return tm_cands[-1], tk_cands[-1]


def project_features(x, rel_weight):
    """Y_r = X @ W_r with bf16 operands / f32 accumulation, stored bf16 — exactly the
    operand the kernel consumes (no global 'highest' precision on the hot path)."""
    y = jnp.einsum("ni,rio->rno",
                   x.astype(jnp.bfloat16), rel_weight.astype(jnp.bfloat16),
                   preferred_element_type=jnp.float32)
    return y.astype(jnp.bfloat16)


def self_loop_bias(x, loop_weight, bias):
    """h0 = X @ W_loop + bias, exact f32 (tiny vs the N^2-scale kernel work)."""
    h = jnp.dot(x, loop_weight, precision=lax.Precision.HIGHEST,
                preferred_element_type=jnp.float32)
    return h + bias[None, :].astype(jnp.float32)


def rel_graph_conv_hetero(adj, x, rel_weight, loop_weight, bias):
    """adj: (R, N, N) {0,1}, x: (N, F_in), rel_weight: (R, F_in, F_out),
    loop_weight: (F_in, F_out), bias: (F_out,).  Returns (N, F_out) f32."""
    R, N, _ = adj.shape
    F_out = rel_weight.shape[-1]

    vmem_cap = _vmem_capacity_bytes()
    vmem_budget = (3 * vmem_cap) // 4          # ~48 MiB on v7x, ~96 MiB on v5e/v6e
    tm, tk = _choose_tiles(N, R, F_out, vmem_budget)
    assert N % tm == 0 and N % tk == 0, "demo wrapper assumes divisible tiles"
    nk = N // tk

    # Tiny precomputation kept outside the N^2-scale kernel.
    y = project_features(x, rel_weight)                  # (R, N, F_out) bf16
    y = y.reshape(R * nk, tk, F_out)                     # contiguous => free reshape
    h0 = self_loop_bias(x, loop_weight, bias)            # (N, F_out) f32
    a_i8 = adj.astype(jnp.int8)                          # 0/1 -> int8: halves A bytes

    return pl.pallas_call(
        rgcn_kernel,
        out_shape=jax.ShapeDtypeStruct((N, F_out), jnp.float32),
        grid=(N // tm, R, nk),
        in_specs=[
            # A_r destination/source tile, streamed from HBM as int8
            pl.BlockSpec((pl.Squeezed(), tm, tk), lambda i, r, k: (r, i, k)),
            # Y fully VMEM-resident: one full-array block, indexed inside the kernel
            pl.BlockSpec((R * nk, tk, F_out), lambda i, r, k: (0, 0, 0)),
            # self-loop + bias initializer tile
            pl.BlockSpec((tm, F_out), lambda i, r, k: (i, 0)),
        ],
        out_specs=pl.BlockSpec((tm, F_out), lambda i, r, k: (i, 0)),  # resident acc
        scratch_shapes=[
            pltpu.VMEM((tm, 1), jnp.float32),       # per-relation in-degree
            pltpu.VMEM((tm, F_out), jnp.float32),   # per-relation message accumulator
        ],
        compiler_params=pltpu.CompilerParams(
            dimension_semantics=("parallel", "arbitrary", "arbitrary"),
            vmem_limit_bytes=int(vmem_budget)),
    )(a_i8, y, h0)


# ---------------------------------------------------------------------- references

def xavier_uniform(key, shape, gain):
    fan_in, fan_out = shape[-2], shape[-1]
    bound = gain * jnp.sqrt(6.0 / (fan_in + fan_out))
    return jax.random.uniform(key, shape, jnp.float32, -bound, bound)


def reference_fp32(adj, x, W, loopW, bias):
    """Pure f32 reference of the module forward (high-precision matmuls)."""
    deg = jnp.clip(adj.sum(axis=2), 1.0, None)                      # (R, N)
    msg = jnp.einsum("rds,sf->rdf", adj, x, precision=lax.Precision.HIGHEST)
    msg = msg / deg[:, :, None]
    h = jnp.einsum("rdf,rfo->do", msg, W, precision=lax.Precision.HIGHEST)
    h = h + jnp.dot(x, loopW, precision=lax.Precision.HIGHEST) + bias
    return jax.nn.relu(h)


def reference_quantized(adj, x, W, loopW, bias):
    """Same math, with A (int8) and Y_r = X @ W_r (bf16) quantized exactly as the
    kernel sees them, f32 accumulation -> isolates kernel math at tight tolerance."""
    a = adj.astype(jnp.int8).astype(jnp.float32)                     # exact for 0/1
    y = project_features(x, W).astype(jnp.float32)                   # bf16 -> f32
    deg = jnp.clip(a.sum(axis=2), 1.0, None)[:, :, None]
    msg = jnp.einsum("rds,rso->rdo", a, y, precision=lax.Precision.HIGHEST) / deg
    h = msg.sum(axis=0) + self_loop_bias(x, loopW, bias)
    return jax.nn.relu(h)


# ----------------------------------------------------------------------------- demo

if __name__ == "__main__":
    # Small, TPU-tile-friendly demo shapes (lane-dense F_out = 128).
    # NOTE: any perf measured here is grid-step-overhead noise; realistic behavior
    # (HBM-bound, ~2-3x from int8 A + resident Y + big tiles) appears at large N.
    N, IN_FEAT, OUT_FEAT = 256, 64, 128
    NUM_RELS, NUM_BASES = 4, 2            # num_bases < len(rel_names) -> WeightBasis

    key = jax.random.PRNGKey(0)
    k_x, k_adj, k_basis, k_coef, k_loop, k_bias = jax.random.split(key, 6)

    # node features (single node type)
    x = jax.random.normal(k_x, (N, IN_FEAT), jnp.float32)

    # per-relation dense adjacency (dst x src), binary
    adj = jax.random.bernoulli(k_adj, 0.1, (NUM_RELS, N, N)).astype(jnp.float32)

    # WeightBasis: W_r = sum_b coeff[r, b] * basis[b]
    gain = jnp.sqrt(2.0)                  # calculate_gain('relu')
    basis = xavier_uniform(k_basis, (NUM_BASES, IN_FEAT, OUT_FEAT), gain)
    coeff = xavier_uniform(k_coef, (NUM_RELS, NUM_BASES), 1.0)
    rel_weight = jnp.einsum("rb,bio->rio", coeff, basis)

    # self-loop weight and bias (module inits bias to zeros; small nonzero here to
    # actually exercise the bias-add path)
    loop_weight = xavier_uniform(k_loop, (IN_FEAT, OUT_FEAT), gain)
    bias = 0.1 * jax.random.normal(k_bias, (OUT_FEAT,), jnp.float32)

    out = rel_graph_conv_hetero(adj, x, rel_weight, loop_weight, bias)
    out = jax.block_until_ready(out)
    assert out.shape == (N, OUT_FEAT)

    # Tight check: same int8/bf16-quantized operands as the kernel (isolates kernel math).
    ref_tight = reference_quantized(adj, x, rel_weight, loop_weight, bias)
    assert jnp.allclose(out, ref_tight, atol=1e-4, rtol=1e-4), \
        "mismatch vs. quantized-input reference"

    # Loose check: full-f32 module semantics (difference = bf16 quantization of Y).
    ref_f32 = reference_fp32(adj, x, rel_weight, loop_weight, bias)
    assert jnp.allclose(out, ref_f32, atol=3e-2, rtol=3e-2), \
        "mismatch vs. f32 reference beyond quantization budget"

    print("KERNEL_OK")
</pallas_src>

<mosaic_0001>
module attributes {stable_mosaic.version = 11 : i64} {
  func.func @rgcn_kernel(%arg0: i32, %arg1: i32, %arg2: i32, %arg3: memref<1x256x256xi8, #tpu.memory_space<vmem>>, %arg4: memref<4x256x128xbf16, #tpu.memory_space<vmem>>, %arg5: memref<256x128xf32, #tpu.memory_space<vmem>>, %arg6: memref<256x128xf32, #tpu.memory_space<vmem>>, %arg7: memref<256x1xf32, #tpu.memory_space<vmem>>, %arg8: memref<256x128xf32, #tpu.memory_space<vmem>>) attributes {dimension_semantics = [#tpu.dimension_semantics<parallel>, #tpu.dimension_semantics<arbitrary>, #tpu.dimension_semantics<arbitrary>], iteration_bounds = array<i64: 1, 4, 1>, scalar_prefetch = 0 : i64, scratch_operands = 2 : i64, tpu.core_type = #tpu.core_type<tc>, window_params = [{transform_indices = @transform_0, window_bounds = array<i64: 1, 256, 256>}, {pipeline_mode = #tpu.pipeline_mode<synchronous>, transform_indices = @transform_1, window_bounds = array<i64: 4, 256, 128>}, {transform_indices = @transform_2, window_bounds = array<i64: 256, 128>}, {transform_indices = @transform_3, window_bounds = array<i64: 256, 128>}]} {
    %c0_i32 = arith.constant 0 : i32
    %0 = arith.cmpi eq, %arg1, %c0_i32 : i32
    %c0_i32_0 = arith.constant 0 : i32
    %1 = arith.cmpi eq, %arg2, %c0_i32_0 : i32
    %2 = arith.andi %0, %1 : i1
    %3 = arith.extui %2 : i1 to i32
    %c0_i32_1 = arith.constant 0 : i32
    %4 = arith.cmpi ne, %3, %c0_i32_1 : i32
    scf.if %4 {
      %c0_21 = arith.constant 0 : index
      %c0_22 = arith.constant 0 : index
      %34 = vector.load %arg5[%c0_21, %c0_22] : memref<256x128xf32, #tpu.memory_space<vmem>>, vector<256x128xf32>
      %c0_23 = arith.constant 0 : index
      %c0_24 = arith.constant 0 : index
      %35 = vector.load %arg6[%c0_23, %c0_24] : memref<256x128xf32, #tpu.memory_space<vmem>>, vector<256x128xf32>
      tpu.vector_store %arg6[%c0_23, %c0_24], %34 {strides = array<i32>} : memref<256x128xf32, #tpu.memory_space<vmem>>, vector<256x128xf32>,
    } else {
    }
    %c0_i32_2 = arith.constant 0 : i32
    %5 = arith.cmpi eq, %arg2, %c0_i32_2 : i32
    %6 = arith.extui %5 : i1 to i32
    %c0_i32_3 = arith.constant 0 : i32
    %7 = arith.cmpi ne, %6, %c0_i32_3 : i32
    scf.if %7 {
      %cst_21 = arith.constant 0.000000e+00 : f32
      %34 = vector.broadcast %cst_21 : f32 to vector<256x1xf32>
      %c0_22 = arith.constant 0 : index
      %c0_23 = arith.constant 0 : index
      %35 = vector.load %arg7[%c0_22, %c0_23] : memref<256x1xf32, #tpu.memory_space<vmem>>, vector<256x1xf32>
      tpu.vector_store %arg7[%c0_22, %c0_23], %34 {strides = array<i32>} : memref<256x1xf32, #tpu.memory_space<vmem>>, vector<256x1xf32>,
      %cst_24 = arith.constant 0.000000e+00 : f32
      %36 = vector.broadcast %cst_24 : f32 to vector<256x128xf32>
      %c0_25 = arith.constant 0 : index
      %c0_26 = arith.constant 0 : index
      %37 = vector.load %arg8[%c0_25, %c0_26] : memref<256x128xf32, #tpu.memory_space<vmem>>, vector<256x128xf32>
      tpu.vector_store %arg8[%c0_25, %c0_26], %36 {strides = array<i32>} : memref<256x128xf32, #tpu.memory_space<vmem>>, vector<256x128xf32>,
    } else {
    }
    %c0 = arith.constant 0 : index
    %c0_4 = arith.constant 0 : index
    %c0_5 = arith.constant 0 : index
    %8 = vector.load %arg3[%c0, %c0_4, %c0_5] : memref<1x256x256xi8, #tpu.memory_space<vmem>>, vector<1x256x256xi8>
    %9 = vector.shape_cast %8 : vector<1x256x256xi8> to vector<256x256xi8>
    %10 = arith.sitofp %9 : vector<256x256xi8> to vector<256x256xbf16>
    %c0_6 = arith.constant 0 : index
    %c0_7 = arith.constant 0 : index
    %11 = vector.load %arg7[%c0_6, %c0_7] : memref<256x1xf32, #tpu.memory_space<vmem>>, vector<256x1xf32>
    %12 = arith.extf %10 : vector<256x256xbf16> to vector<256x256xf32>
    %cst = arith.constant dense<0.000000e+00> : vector<256xf32>
    %13 = vector.multi_reduction <add>, %12, %cst [1] : vector<256x256xf32> to vector<256xf32>
    %14 = vector.shape_cast %13 : vector<256xf32> to vector<256x1xf32>
    %15 = arith.addf %11, %14 : vector<256x1xf32>
    %c0_8 = arith.constant 0 : index
    %c0_9 = arith.constant 0 : index
    %16 = vector.load %arg7[%c0_8, %c0_9] : memref<256x1xf32, #tpu.memory_space<vmem>>, vector<256x1xf32>
    tpu.vector_store %arg7[%c0_8, %c0_9], %15 {strides = array<i32>} : memref<256x1xf32, #tpu.memory_space<vmem>>, vector<256x1xf32>,
    %c1_i32 = arith.constant 1 : i32
    %17 = arith.muli %arg1, %c1_i32 : i32
    %18 = arith.addi %17, %arg2 : i32
    %19 = arith.index_cast %18 : i32 to index
    %c0_10 = arith.constant 0 : index
    %c0_11 = arith.constant 0 : index
    %20 = vector.load %arg4[%19, %c0_10, %c0_11] : memref<4x256x128xbf16, #tpu.memory_space<vmem>>, vector<1x256x128xbf16>
    %21 = vector.shape_cast %20 : vector<1x256x128xbf16> to vector<256x128xbf16>
    %c0_12 = arith.constant 0 : index
    %c0_13 = arith.constant 0 : index
    %22 = vector.load %arg8[%c0_12, %c0_13] : memref<256x128xf32, #tpu.memory_space<vmem>>, vector<256x128xf32>
    %cst_14 = arith.constant dense<0.000000e+00> : vector<256x128xf32>
    %23 = tpu.matmul %10, %21, %cst_14 {dimension_numbers = #tpu.dot_dimension_numbers<[1], [0], [0], [1], [0, 0, 1, 1], [], []>} : vector<256x256xbf16>, vector<256x128xbf16>, vector<256x128xf32> -> vector<256x128xf32>
    %24 = arith.addf %22, %23 : vector<256x128xf32>
    %c0_15 = arith.constant 0 : index
    %c0_16 = arith.constant 0 : index
    %25 = vector.load %arg8[%c0_15, %c0_16] : memref<256x128xf32, #tpu.memory_space<vmem>>, vector<256x128xf32>
    tpu.vector_store %arg8[%c0_15, %c0_16], %24 {strides = array<i32>} : memref<256x128xf32, #tpu.memory_space<vmem>>, vector<256x128xf32>,
    %c0_i32_17 = arith.constant 0 : i32
    %26 = arith.cmpi eq, %arg2, %c0_i32_17 : i32
    %27 = arith.extui %26 : i1 to i32
    %c0_i32_18 = arith.constant 0 : i32
    %28 = arith.cmpi ne, %27, %c0_i32_18 : i32
    scf.if %28 {
      %c0_21 = arith.constant 0 : index
      %c0_22 = arith.constant 0 : index
      %34 = vector.load %arg7[%c0_21, %c0_22] : memref<256x1xf32, #tpu.memory_space<vmem>>, vector<256x1xf32>
      %cst_23 = arith.constant 1.000000e+00 : f32
      %35 = vector.broadcast %cst_23 : f32 to vector<256x1xf32>
      %36 = arith.maximumf %34, %35 : vector<256x1xf32>
      %cst_24 = arith.constant 1.000000e+00 : f32
      %37 = vector.broadcast %cst_24 : f32 to vector<256x1xf32>
      %38 = arith.divf %37, %36 : vector<256x1xf32>
      %c0_25 = arith.constant 0 : index
      %c0_26 = arith.constant 0 : index
      %39 = vector.load %arg6[%c0_25, %c0_26] : memref<256x128xf32, #tpu.memory_space<vmem>>, vector<256x128xf32>
      %c0_27 = arith.constant 0 : index
      %c0_28 = arith.constant 0 : index
      %40 = vector.load %arg8[%c0_27, %c0_28] : memref<256x128xf32, #tpu.memory_space<vmem>>, vector<256x128xf32>
      %41 = vector.broadcast %38 : vector<256x1xf32> to vector<256x128xf32>
      %42 = arith.mulf %40, %41 : vector<256x128xf32>
      %43 = arith.addf %39, %42 : vector<256x128xf32>
      %c0_29 = arith.constant 0 : index
      %c0_30 = arith.constant 0 : index
      %44 = vector.load %arg6[%c0_29, %c0_30] : memref<256x128xf32, #tpu.memory_space<vmem>>, vector<256x128xf32>
      tpu.vector_store %arg6[%c0_29, %c0_30], %43 {strides = array<i32>} : memref<256x128xf32, #tpu.memory_space<vmem>>, vector<256x128xf32>,
    } else {
    }
    %c3_i32 = arith.constant 3 : i32
    %29 = arith.cmpi eq, %arg1, %c3_i32 : i32
    %c0_i32_19 = arith.constant 0 : i32
    %30 = arith.cmpi eq, %arg2, %c0_i32_19 : i32
    %31 = arith.andi %29, %30 : i1
    %32 = arith.extui %31 : i1 to i32
    %c0_i32_20 = arith.constant 0 : i32
    %33 = arith.cmpi ne, %32, %c0_i32_20 : i32
    scf.if %33 {
      %c0_21 = arith.constant 0 : index
      %c0_22 = arith.constant 0 : index
      %34 = vector.load %arg6[%c0_21, %c0_22] : memref<256x128xf32, #tpu.memory_space<vmem>>, vector<256x128xf32>
      %cst_23 = arith.constant 0.000000e+00 : f32
      %35 = vector.broadcast %cst_23 : f32 to vector<256x128xf32>
      %36 = arith.maximumf %34, %35 : vector<256x128xf32>
      %c0_24 = arith.constant 0 : index
      %c0_25 = arith.constant 0 : index
      %37 = vector.load %arg6[%c0_24, %c0_25] : memref<256x128xf32, #tpu.memory_space<vmem>>, vector<256x128xf32>
      tpu.vector_store %arg6[%c0_24, %c0_25], %36 {strides = array<i32>} : memref<256x128xf32, #tpu.memory_space<vmem>>, vector<256x128xf32>,
    } else {
    }
    return
  }
  func.func @transform_0(%arg0: i32, %arg1: i32, %arg2: i32) -> (i32, i32, i32) {
    %c0_i32 = arith.constant 0 : i32
    return %arg1, %arg0, %arg2 : i32, i32, i32
  }
  func.func @transform_1(%arg0: i32, %arg1: i32, %arg2: i32) -> (i32, i32, i32) {
    %c0_i32 = arith.constant 0 : i32
    %c0_i32_0 = arith.constant 0 : i32
    %c0_i32_1 = arith.constant 0 : i32
    %c0_i32_2 = arith.constant 0 : i32
    return %c0_i32, %c0_i32_0, %c0_i32_1 : i32, i32, i32
  }
  func.func @transform_2(%arg0: i32, %arg1: i32, %arg2: i32) -> (i32, i32) {
    %c0_i32 = arith.constant 0 : i32
    %c0_i32_0 = arith.constant 0 : i32
    return %arg0, %c0_i32 : i32, i32
  }
  func.func @transform_3(%arg0: i32, %arg1: i32, %arg2: i32) -> (i32, i32) {
    %c0_i32 = arith.constant 0 : i32
    %c0_i32_0 = arith.constant 0 : i32
    return %arg0, %c0_i32 : i32, i32
  }
}

</mosaic_0001>

<llo_original>
// kernel: tpu_custom_call.1
$region0: #{tpu_custom_call.1}
  #allocation0 [shape = 'u32[]', space=smem, size = 0x4, offset = 0x4, fixed_abs, tag = 'smem constant byte address 0x4 - core index']
  #allocation1 [shape = 'u32[72,128]{1,0:T(1,128)}', space=vmem, size = 0x9000, scoped, tag = 'internal scratch']
  #allocation2 [shape = 'f32[256,1]{1,0:T(8,128)}', space=vmem, size = 0x20000, scoped, tag = 'scratch operand']
  #allocation3 [shape = 'f32[256,128]{1,0:T(8,128)}', space=vmem, size = 0x20000, scoped, tag = 'scratch operand']
  %s0 = inlined_call_operand.hbm [shape: s8[4,256,256], index: 0, kind: input, shape index: {}]
  %s1 = inlined_call_operand.hbm [shape: bf16[4,256,128], index: 1, kind: input, shape index: {}]
  %s2 = inlined_call_operand.hbm [shape: f32[256,128], index: 2, kind: input, shape index: {}]
  %s3 = inlined_call_operand.hbm [shape: f32[256,128], index: 3, kind: output, shape index: {}]
  %s4 = sld [smem:[#allocation0]]
  $region73: #{tpu_custom_call.1} parent=0
    _
  %s6 = ssub.s32 1, %s4
  %s7 = scalar_select 0, %s6, %s4
  $region1: #{tpu_custom_call.1} parent=0
    #allocation4 [shape = 'u8[131072]{0}', space=vmem, size = 0x20000, scoped, tag = 'input window, operand 0']
    #allocation5 [shape = 's32[2]{0}', space=sflag, size = 0x8, scoped, tag = 'scoped memory for tpu_custom_call.1']
    #allocation6 [shape = 's32[2]{0}', space=sflag, size = 0x8, scoped, tag = 'scoped memory for tpu_custom_call.1']
    #allocation7 [shape = 'u8[262144]{0}', space=vmem, size = 0x40000, scoped, tag = 'input window, operand 1, single buffered']
    #allocation8 [shape = 's32[1]{0}', space=sflag, size = 0x4, scoped, tag = 'scoped memory for tpu_custom_call.1']
    #allocation9 [shape = 'u8[131072]{0}', space=vmem, size = 0x20000, scoped, tag = 'input window, operand 2, single buffered']
    #allocation10 [shape = 'u8[131072]{0}', space=vmem, size = 0x20000, scoped, tag = 'output window, operand 0, single buffered']
    %8 = vsyncpa [#allocation5], 0
    %s9 = scalar_lea.sflag [#allocation5], 1
    %10 = vsyncpa %s9, 0
    %11 = vsyncpa [#allocation8], 0
    %12 = vsyncpa [#allocation6], 0
    loop: start=0, step=1, limit=6
    $region2: #{tpu_custom_call.1} parent=1 // loop_pre_header
      _
    $region3: #{tpu_custom_call.1} parent=1 // loop_header
      %s14 = sphi 0, %s18
      %p15 = scmp.ge.s32.totalorder %s14, 6
      %s21 = sphi 0, %s40
      %s22 = sphi 0, %s36
      %s23 = sphi 0, %s32
      %s24 = sphi 0, %s21
      %s25 = sphi 0, %s22
      %s26 = sphi 0, %s23
      %s27 = sphi 0, %s24
      %s28 = sphi 0, %s25
      %s29 = sphi 0, %s26
      %s47 = sphi 0, %s49
      %s50 = sphi 0, %s47
      %s51 = sphi 0, %s50
      %s67 = sphi 0, %s51
      %s71 = sphi 0, %s71
      %s73 = sphi 0, %s71
      %s74 = sphi 0, %s73
      %s88 = sphi 0, %s74
      %s94 = sphi 0, %s96
      %s97 = sphi 0, %s94
      %s98 = sphi 0, %s97
      %s114 = sphi 0, %s98
      %s120 = sphi 0, %s122
      %s123 = sphi 0, %s120
      %s124 = sphi 0, %s123
      %s140 = sphi 0, %s124
    $region4: #{tpu_custom_call.1} parent=1 // loop_header_branch
      %17 = sbr.rel (%p15) target = $region8
    $region5: #{tpu_custom_call.1} parent=1 // loop_body
      %s19 = ssub.s32 %s14, 1
      %s20 = ssub.s32 %s14, 2
      %s30 = sadd.s32 1, %s23
      %p31 = scmp.ge.s32.totalorder %s30, 1
      %s32 = scalar_select %p31, 0, %s30
      %s33 = sadd.s32 1, %s22
      %s34 = scalar_select %p31, %s33, %s22
      %p35 = scmp.ge.s32.totalorder %s34, 4
      %s36 = scalar_select %p35, 0, %s34
      %s37 = sadd.s32 1, %s21
      %s38 = scalar_select %p35, %s37, %s21
      %p39 = scmp.ge.s32.totalorder %s38, 1
      %s40 = scalar_select %p39, 0, %s38
      %s41 = ssub.s32 %s22, %s36
      %s42 = ssub.s32 %s21, %s40
      %s43 = sor.u32 %s41, %s42
      %s44 = ssub.s32 %s23, %s32
      %s45 = sor.u32 %s43, %s44
      %p46 = scmp.eq.s32.totalorder %s45, 0
      %s48 = sadd.s32 %s47, 1
      %s49 = scalar_select %p46, %s47, %s48
      %p52 = pneg %p46
      %p53 = scmp.eq.s32.totalorder %s14, 3
      %p54 = por %p52, %p53
      %p55 = scmp.ne.s32.totalorder %s47, %s50
      %p56 = scmp.eq.s32.totalorder %s14, 0
      %p57 = por %p55, %p56
      %p58 = scmp.ne.s32.totalorder %s47, %s50
      %p59 = scmp.eq.s32.totalorder %s19, 3
      %p60 = por %p58, %p59
      %p61 = scmp.ne.s32.totalorder %s50, %s51
      %p62 = scmp.eq.s32.totalorder %s19, 0
      %p63 = por %p61, %p62
      %p64 = scmp.ne.s32.totalorder %s50, %s51
      %p65 = scmp.eq.s32.totalorder %s20, 3
      %p66 = por %p64, %p65
      %p68 = scmp.ne.s32.totalorder %s51, %s67
      %p69 = scmp.eq.s32.totalorder %s20, 0
      %p70 = por %p68, %p69
      %s72 = sadd.s32 %s71, 1
      %p75 = scmp.eq.s32.totalorder %s14, 3
      %p76 = scmp.ne.s32.totalorder %s71, %s73
      %p77 = scmp.eq.s32.totalorder %s14, 0
      %p78 = por %p76, %p77
      %p79 = scmp.ne.s32.totalorder %s71, %s73
      %p80 = scmp.eq.s32.totalorder %s19, 3
      %p81 = por %p79, %p80
      %p82 = scmp.ne.s32.totalorder %s73, %s74
      %p83 = scmp.eq.s32.totalorder %s19, 0
      %p84 = por %p82, %p83
      %p85 = scmp.ne.s32.totalorder %s73, %s74
      %p86 = scmp.eq.s32.totalorder %s20, 3
      %p87 = por %p85, %p86
      %p89 = scmp.ne.s32.totalorder %s74, %s88
      %p90 = scmp.eq.s32.totalorder %s20, 0
      %p91 = por %p89, %p90
      %s92 = ssub.s32 %s21, %s40
      %p93 = scmp.eq.s32.totalorder %s92, 0
      %s95 = sadd.s32 %s94, 1
      %s96 = scalar_select %p93, %s94, %s95
      %p99 = pneg %p93
      %p100 = scmp.eq.s32.totalorder %s14, 3
      %p101 = por %p99, %p100
      %p102 = scmp.ne.s32.totalorder %s94, %s97
      %p103 = scmp.eq.s32.totalorder %s14, 0
      %p104 = por %p102, %p103
      %p105 = scmp.ne.s32.totalorder %s94, %s97
      %p106 = scmp.eq.s32.totalorder %s19, 3
      %p107 = por %p105, %p106
      %p108 = scmp.ne.s32.totalorder %s97, %s98
      %p109 = scmp.eq.s32.totalorder %s19, 0
      %p110 = por %p108, %p109
      %p111 = scmp.ne.s32.totalorder %s97, %s98
      %p112 = scmp.eq.s32.totalorder %s20, 3
      %p113 = por %p111, %p112
      %p115 = scmp.ne.s32.totalorder %s98, %s114
      %p116 = scmp.eq.s32.totalorder %s20, 0
      %p117 = por %p115, %p116
      %s118 = ssub.s32 %s21, %s40
      %p119 = scmp.eq.s32.totalorder %s118, 0
      %s121 = sadd.s32 %s120, 1
      %s122 = scalar_select %p119, %s120, %s121
      %p125 = pneg %p119
      %p126 = scmp.eq.s32.totalorder %s14, 3
      %p127 = por %p125, %p126
      %p128 = scmp.ne.s32.totalorder %s120, %s123
      %p129 = scmp.eq.s32.totalorder %s14, 0
      %p130 = por %p128, %p129
      %p131 = scmp.ne.s32.totalorder %s120, %s123
      %p132 = scmp.eq.s32.totalorder %s19, 3
      %p133 = por %p131, %p132
      %p134 = scmp.ne.s32.totalorder %s123, %s124
      %p135 = scmp.eq.s32.totalorder %s19, 0
      %p136 = por %p134, %p135
      %p137 = scmp.ne.s32.totalorder %s123, %s124
      %p138 = scmp.eq.s32.totalorder %s20, 3
      %p139 = por %p137, %p138
      %p141 = scmp.ne.s32.totalorder %s124, %s140
      %p142 = scmp.eq.s32.totalorder %s20, 0
      %p143 = por %p141, %p142
      %p144 = scmp.le.s32.totalorder 1, %s14
      %p145 = scmp.lt.s32.totalorder %s14, 5
      %p146 = pnand %p144, %p145
      %p147 = pneg %p146
      // Predicated region
      $region9: #{tpu_custom_call.1} parent=5 // pred_check
        _
      $region10: #{tpu_custom_call.1} parent=5 // pred_check_branch
        %149 = sbr.rel (%p146) target = $region12
      $region11: #{tpu_custom_call.1} parent=5 // pred_region
        %s150 = ssub.s32 %s14, 1
        // Predicated region
        $region13: #{tpu_custom_call.1} parent=11 // pred_check
          %p151 = pneg %p84
        $region14: #{tpu_custom_call.1} parent=11 // pred_check_branch
          %153 = sbr.rel (%p151) target = $region16
        $region15: #{tpu_custom_call.1} parent=11 // pred_region
          %155 = vsyncadd [#allocation8], 0
          %s156 = sshll.u32 %s1, 4
          %s157 = int_to_ptr.hbm [resolvable:$true] %s156
          %s158 = sshll.u32 [#allocation7], 4
          %s159 = int_to_ptr.vmem [resolvable:$true] %s158
          %164 = dma.hbm_to_vmem [thread:$0]  %s157, 8192, %s159, [#allocation8], 64, 64, 4
        $region16: #{tpu_custom_call.1} parent=11 // pred_fallthru
          _
        // Predicated region
        $region17: #{tpu_custom_call.1} parent=11 // pred_check
          %p165 = pneg %p110
        $region18: #{tpu_custom_call.1} parent=11 // pred_check_branch
          %167 = sbr.rel (%p165) target = $region20
        $region19: #{tpu_custom_call.1} parent=11 // pred_region
          %s168 = smul.u32 32, %s24
          %170 = vsyncadd [#allocation8], 0
          %s171 = smul.addr %s168, 8
          %s172 = scalar_lea.hbm %s2, %s171
          %s173 = sshll.u32 %s172, 4
          %s174 = int_to_ptr.hbm [resolvable:$true] %s173
          %s175 = sshll.u32 [#allocation9], 4
          %s176 = int_to_ptr.vmem [resolvable:$true] %s175
          %181 = dma.hbm_to_vmem [thread:$0]  %s174, 4096, %s176, [#allocation8], 128, 128, 8
        $region20: #{tpu_custom_call.1} parent=11 // pred_fallthru
          _
      $region12: #{tpu_custom_call.1} parent=5 // pred_fallthru
        _
      %p182 = scmp.lt.s32.totalorder %s14, 4
      // Predicated region
      $region21: #{tpu_custom_call.1} parent=5 // pred_check
        %p183 = pneg %p182
      $region22: #{tpu_custom_call.1} parent=5 // pred_check_branch
        %185 = sbr.rel (%p183) target = $region24
      $region23: #{tpu_custom_call.1} parent=5 // pred_region
        // Predicated region
        $region25: #{tpu_custom_call.1} parent=23 // pred_check
          %p186 = pneg %p57
        $region26: #{tpu_custom_call.1} parent=23 // pred_check_branch
          %188 = sbr.rel (%p186) target = $region28
        $region27: #{tpu_custom_call.1} parent=23 // pred_region
          %s189 = sand.u32 %s47, 1
          %s190 = scalar_lea.sflag [#allocation5], %s189
          %s191 = sand.u32 %s47, 1
          %s192 = smul.addr %s191, 128
          %s193 = scalar_lea.vmem [#allocation4], %s192
          %s194 = smul.u32 8, %s21
          %s195 = smul.u32 2, %s23
          %197 = vsyncadd %s190, 0
          %s198 = smul.addr %s194, 2
          %s199 = sadd.s32 %s195, %s198
          %s200 = smul.addr %s22, 16
          %s201 = sadd.s32 %s199, %s200
          %s202 = smul.addr %s201, 8
          %s203 = scalar_lea.hbm %s0, %s202
          %s204 = sshll.u32 %s203, 4
          %s205 = int_to_ptr.hbm [resolvable:$true] %s204
          %s206 = sshll.u32 %s193, 4
          %s207 = int_to_ptr.vmem [resolvable:$true] %s206
          %212 = dma.hbm_to_vmem [thread:$0]  %s205, 2048, %s207, %s190, 256, 256, 16
        $region28: #{tpu_custom_call.1} parent=23 // pred_fallthru
          _
      $region24: #{tpu_custom_call.1} parent=5 // pred_fallthru
        _
      %p213 = scmp.le.s32.totalorder 1, %s14
      %p214 = scmp.lt.s32.totalorder %s14, 5
      %p215 = pnand %p213, %p214
      %p216 = pneg %p215
      // Predicated region
      $region29: #{tpu_custom_call.1} parent=5 // pred_check
        _
      $region30: #{tpu_custom_call.1} parent=5 // pred_check_branch
        %218 = sbr.rel (%p215) target = $region32
      $region31: #{tpu_custom_call.1} parent=5 // pred_region
        %s219 = ssub.s32 %s14, 1
        %s220 = sand.u32 %s50, 1
        %s221 = scalar_lea.sflag [#allocation5], %s220
        %s222 = sand.u32 %s50, 1
        %s223 = smul.addr %s222, 128
        %s224 = scalar_lea.vmem [#allocation4], %s223
        // Predicated region
        $region33: #{tpu_custom_call.1} parent=31 // pred_check
          %p225 = pneg %p63
        $region34: #{tpu_custom_call.1} parent=31 // pred_check_branch
          %227 = sbr.rel (%p225) target = $region36
        $region35: #{tpu_custom_call.1} parent=31 // pred_region
          %229 = dma.done %s221, 2048
        $region36: #{tpu_custom_call.1} parent=31 // pred_fallthru
          _
        // Predicated region
        $region37: #{tpu_custom_call.1} parent=31 // pred_check
          %p230 = pneg %p84
        $region38: #{tpu_custom_call.1} parent=31 // pred_check_branch
          %232 = sbr.rel (%p230) target = $region40
        $region39: #{tpu_custom_call.1} parent=31 // pred_region
          %234 = dma.done [#allocation8], 8192
        $region40: #{tpu_custom_call.1} parent=31 // pred_fallthru
          _
        // Predicated region
        $region41: #{tpu_custom_call.1} parent=31 // pred_check
          %p235 = pneg %p110
        $region42: #{tpu_custom_call.1} parent=31 // pred_check_branch
          %237 = sbr.rel (%p235) target = $region44
        $region43: #{tpu_custom_call.1} parent=31 // pred_region
          %239 = dma.done [#allocation8], 4096
        $region44: #{tpu_custom_call.1} parent=31 // pred_fallthru
          _
        %s240 = sand.u32 %s50, 1
        %s241 = scalar_lea.sflag [#allocation5], %s240
        %s242 = sand.u32 %s50, 1
        %s243 = smul.addr %s242, 128
        %s244 = scalar_lea.vmem [#allocation4], %s243
        %p245 = pneg %p63
        %p246 = pneg %p60
        %p247 = pneg %p84
        %p248 = pneg %p81
        %p249 = pneg %p110
        %p250 = pneg %p107
        %p251 = pneg %p136
        %p252 = pneg %p133
        %s253 = smul.u32 8, %s24
        %s254 = smul.u32 2, %s26
        %s255 = smul.u32 32, %s24
        %s256 = smul.u32 32, %s24
        %p257 = scmp.eq.s32.totalorder %s25, 0
        %p258 = scmp.eq.s32.totalorder %s26, 0
        %p259 = pnand %p257, %p258
        %p260 = pneg %p259
        // Predicated region
        $region45: #{tpu_custom_call.1} parent=31 // pred_check
          _
        $region46: #{tpu_custom_call.1} parent=31 // pred_check_branch
          %262 = sbr.rel (%p259) target = $region48
        $region47: #{tpu_custom_call.1} parent=31 // pred_region
          %v263 = vld [vmem:[#allocation9] sm:$0xff]
          %v264 = vld [vmem:[#allocation9 + $0x8] sm:$0xff]
          %v265 = vld [vmem:[#allocation9 + $0x10] sm:$0xff]
          %v266 = vld [vmem:[#allocation9 + $0x18] sm:$0xff]
          %v267 = vld [vmem:[#allocation9 + $0x20] sm:$0xff]
          %v268 = vld [vmem:[#allocation9 + $0x28] sm:$0xff]
          %v269 = vld [vmem:[#allocation9 + $0x30] sm:$0xff]
          %v270 = vld [vmem:[#allocation9 + $0x38] sm:$0xff]
          %v271 = vld [vmem:[#allocation9 + $0x40] sm:$0xff]
          %v272 = vld [vmem:[#allocation9 + $0x48] sm:$0xff]
          %v273 = vld [vmem:[#allocation9 + $0x50] sm:$0xff]
          %v274 = vld [vmem:[#allocation9 + $0x58] sm:$0xff]
          %v275 = vld [vmem:[#allocation9 + $0x60] sm:$0xff]
          %v276 = vld [vmem:[#allocation9 + $0x68] sm:$0xff]
          %v277 = vld [vmem:[#allocation9 + $0x70] sm:$0xff]
          %v278 = vld [vmem:[#allocation9 + $0x78] sm:$0xff]
          %v279 = vld [vmem:[#allocation9 + $0x80] sm:$0xff]
          %v280 = vld [vmem:[#allocation9 + $0x88] sm:$0xff]
          %v281 = vld [vmem:[#allocation9 + $0x90] sm:$0xff]
          %v282 = vld [vmem:[#allocation9 + $0x98] sm:$0xff]
          %v283 = vld [vmem:[#allocation9 + $0xa0] sm:$0xff]
          %v284 = vld [vmem:[#allocation9 + $0xa8] sm:$0xff]
          %v285 = vld [vmem:[#allocation9 + $0xb0] sm:$0xff]
          %v286 = vld [vmem:[#allocation9 + $0xb8] sm:$0xff]
          %v287 = vld [vmem:[#allocation9 + $0xc0] sm:$0xff]
          %v288 = vld [vmem:[#allocation9 + $0xc8] sm:$0xff]
          %v289 = vld [vmem:[#allocation9 + $0xd0] sm:$0xff]
          %v290 = vld [vmem:[#allocation9 + $0xd8] sm:$0xff]
          %v291 = vld [vmem:[#allocation9 + $0xe0] sm:$0xff]
          %v292 = vld [vmem:[#allocation9 + $0xe8] sm:$0xff]
          %v293 = vld [vmem:[#allocation9 + $0xf0] sm:$0xff]
          %v294 = vld [vmem:[#allocation9 + $0xf8] sm:$0xff]
          %295 = vst [vmem:[#allocation10] sm:$0xff] %v263
          %296 = vst [vmem:[#allocation10 + $0x8] sm:$0xff] %v264
          %297 = vst [vmem:[#allocation10 + $0x10] sm:$0xff] %v265
          %298 = vst [vmem:[#allocation10 + $0x18] sm:$0xff] %v266
          %299 = vst [vmem:[#allocation10 + $0x20] sm:$0xff] %v267
          %300 = vst [vmem:[#allocation10 + $0x28] sm:$0xff] %v268
          %301 = vst [vmem:[#allocation10 + $0x30] sm:$0xff] %v269
          %302 = vst [vmem:[#allocation10 + $0x38] sm:$0xff] %v270
          %303 = vst [vmem:[#allocation10 + $0x40] sm:$0xff] %v271
          %304 = vst [vmem:[#allocation10 + $0x48] sm:$0xff] %v272
          %305 = vst [vmem:[#allocation10 + $0x50] sm:$0xff] %v273
          %306 = vst [vmem:[#allocation10 + $0x58] sm:$0xff] %v274
          %307 = vst [vmem:[#allocation10 + $0x60] sm:$0xff] %v275
          %308 = vst [vmem:[#allocation10 + $0x68] sm:$0xff] %v276
          %309 = vst [vmem:[#allocation10 + $0x70] sm:$0xff] %v277
          %310 = vst [vmem:[#allocation10 + $0x78] sm:$0xff] %v278
          %311 = vst [vmem:[#allocation10 + $0x80] sm:$0xff] %v279
          %312 = vst [vmem:[#allocation10 + $0x88] sm:$0xff] %v280
          %313 = vst [vmem:[#allocation10 + $0x90] sm:$0xff] %v281
          %314 = vst [vmem:[#allocation10 + $0x98] sm:$0xff] %v282
          %315 = vst [vmem:[#allocation10 + $0xa0] sm:$0xff] %v283
          %316 = vst [vmem:[#allocation10 + $0xa8] sm:$0xff] %v284
          %317 = vst [vmem:[#allocation10 + $0xb0] sm:$0xff] %v285
          %318 = vst [vmem:[#allocation10 + $0xb8] sm:$0xff] %v286
          %319 = vst [vmem:[#allocation10 + $0xc0] sm:$0xff] %v287
          %320 = vst [vmem:[#allocation10 + $0xc8] sm:$0xff] %v288
          %321 = vst [vmem:[#allocation10 + $0xd0] sm:$0xff] %v289
          %322 = vst [vmem:[#allocation10 + $0xd8] sm:$0xff] %v290
          %323 = vst [vmem:[#allocation10 + $0xe0] sm:$0xff] %v291
          %324 = vst [vmem:[#allocation10 + $0xe8] sm:$0xff] %v292
          %325 = vst [vmem:[#allocation10 + $0xf0] sm:$0xff] %v293
          %326 = vst [vmem:[#allocation10 + $0xf8] sm:$0xff] %v294
        $region48: #{tpu_custom_call.1} parent=31 // pred_fallthru
          _
        // Predicated region
        $region49: #{tpu_custom_call.1} parent=31 // pred_check
          %p327 = pneg %p258
        $region50: #{tpu_custom_call.1} parent=31 // pred_check_branch
          %329 = sbr.rel (%p327) target = $region52
        $region51: #{tpu_custom_call.1} parent=31 // pred_region
          %vm330 = vcmask 7168
          %331 = vst.msk [vmem:[#allocation2] sm:$0xff] %vm330, 0.0
          %332 = vst.msk [vmem:[#allocation2 + $0x8] sm:$0xff] %vm330, 0.0
          %333 = vst.msk [vmem:[#allocation2 + $0x10] sm:$0xff] %vm330, 0.0
          %334 = vst.msk [vmem:[#allocation2 + $0x18] sm:$0xff] %vm330, 0.0
          %335 = vst.msk [vmem:[#allocation2 + $0x20] sm:$0xff] %vm330, 0.0
          %336 = vst.msk [vmem:[#allocation2 + $0x28] sm:$0xff] %vm330, 0.0
          %337 = vst.msk [vmem:[#allocation2 + $0x30] sm:$0xff] %vm330, 0.0
          %338 = vst.msk [vmem:[#allocation2 + $0x38] sm:$0xff] %vm330, 0.0
          %339 = vst.msk [vmem:[#allocation2 + $0x40] sm:$0xff] %vm330, 0.0
          %340 = vst.msk [vmem:[#allocation2 + $0x48] sm:$0xff] %vm330, 0.0
          %341 = vst.msk [vmem:[#allocation2 + $0x50] sm:$0xff] %vm330, 0.0
          %342 = vst.msk [vmem:[#allocation2 + $0x58] sm:$0xff] %vm330, 0.0
          %343 = vst.msk [vmem:[#allocation2 + $0x60] sm:$0xff] %vm330, 0.0
          %344 = vst.msk [vmem:[#allocation2 + $0x68] sm:$0xff] %vm330, 0.0
          %345 = vst.msk [vmem:[#allocation2 + $0x70] sm:$0xff] %vm330, 0.0
          %346 = vst.msk [vmem:[#allocation2 + $0x78] sm:$0xff] %vm330, 0.0
          %347 = vst.msk [vmem:[#allocation2 + $0x80] sm:$0xff] %vm330, 0.0
          %348 = vst.msk [vmem:[#allocation2 + $0x88] sm:$0xff] %vm330, 0.0
          %349 = vst.msk [vmem:[#allocation2 + $0x90] sm:$0xff] %vm330, 0.0
          %350 = vst.msk [vmem:[#allocation2 + $0x98] sm:$0xff] %vm330, 0.0
          %351 = vst.msk [vmem:[#allocation2 + $0xa0] sm:$0xff] %vm330, 0.0
          %352 = vst.msk [vmem:[#allocation2 + $0xa8] sm:$0xff] %vm330, 0.0
          %353 = vst.msk [vmem:[#allocation2 + $0xb0] sm:$0xff] %vm330, 0.0
          %354 = vst.msk [vmem:[#allocation2 + $0xb8] sm:$0xff] %vm330, 0.0
          %355 = vst.msk [vmem:[#allocation2 + $0xc0] sm:$0xff] %vm330, 0.0
          %356 = vst.msk [vmem:[#allocation2 + $0xc8] sm:$0xff] %vm330, 0.0
          %357 = vst.msk [vmem:[#allocation2 + $0xd0] sm:$0xff] %vm330, 0.0
          %358 = vst.msk [vmem:[#allocation2 + $0xd8] sm:$0xff] %vm330, 0.0
          %359 = vst.msk [vmem:[#allocation2 + $0xe0] sm:$0xff] %vm330, 0.0
          %360 = vst.msk [vmem:[#allocation2 + $0xe8] sm:$0xff] %vm330, 0.0
          %361 = vst.msk [vmem:[#allocation2 + $0xf0] sm:$0xff] %vm330, 0.0
          %362 = vst.msk [vmem:[#allocation2 + $0xf8] sm:$0xff] %vm330, 0.0
          %363 = vst [vmem:[#allocation3] sm:$0xff] 0.0
          %364 = vst [vmem:[#allocation3 + $0x8] sm:$0xff] 0.0
          %365 = vst [vmem:[#allocation3 + $0x10] sm:$0xff] 0.0
          %366 = vst [vmem:[#allocation3 + $0x18] sm:$0xff] 0.0
          %367 = vst [vmem:[#allocation3 + $0x20] sm:$0xff] 0.0
          %368 = vst [vmem:[#allocation3 + $0x28] sm:$0xff] 0.0
          %369 = vst [vmem:[#allocation3 + $0x30] sm:$0xff] 0.0
          %370 = vst [vmem:[#allocation3 + $0x38] sm:$0xff] 0.0
          %371 = vst [vmem:[#allocation3 + $0x40] sm:$0xff] 0.0
          %372 = vst [vmem:[#allocation3 + $0x48] sm:$0xff] 0.0
          %373 = vst [vmem:[#allocation3 + $0x50] sm:$0xff] 0.0
          %374 = vst [vmem:[#allocation3 + $0x58] sm:$0xff] 0.0
          %375 = vst [vmem:[#allocation3 + $0x60] sm:$0xff] 0.0
          %376 = vst [vmem:[#allocation3 + $0x68] sm:$0xff] 0.0
          %377 = vst [vmem:[#allocation3 + $0x70] sm:$0xff] 0.0
          %378 = vst [vmem:[#allocation3 + $0x78] sm:$0xff] 0.0
          %379 = vst [vmem:[#allocation3 + $0x80] sm:$0xff] 0.0
          %380 = vst [vmem:[#allocation3 + $0x88] sm:$0xff] 0.0
          %381 = vst [vmem:[#allocation3 + $0x90] sm:$0xff] 0.0
          %382 = vst [vmem:[#allocation3 + $0x98] sm:$0xff] 0.0
          %383 = vst [vmem:[#allocation3 + $0xa0] sm:$0xff] 0.0
          %384 = vst [vmem:[#allocation3 + $0xa8] sm:$0xff] 0.0
          %385 = vst [vmem:[#allocation3 + $0xb0] sm:$0xff] 0.0
          %386 = vst [vmem:[#allocation3 + $0xb8] sm:$0xff] 0.0
          %387 = vst [vmem:[#allocation3 + $0xc0] sm:$0xff] 0.0
          %388 = vst [vmem:[#allocation3 + $0xc8] sm:$0xff] 0.0
          %389 = vst [vmem:[#allocation3 + $0xd0] sm:$0xff] 0.0
          %390 = vst [vmem:[#allocation3 + $0xd8] sm:$0xff] 0.0
          %391 = vst [vmem:[#allocation3 + $0xe0] sm:$0xff] 0.0
          %392 = vst [vmem:[#allocation3 + $0xe8] sm:$0xff] 0.0
          %393 = vst [vmem:[#allocation3 + $0xf0] sm:$0xff] 0.0
          %394 = vst [vmem:[#allocation3 + $0xf8] sm:$0xff] 0.0
        $region52: #{tpu_custom_call.1} parent=31 // pred_fallthru
          _
        %v395 = vld [vmem:[%s224] sm:$0xff]
        %v396 = vld [vmem:[%s224 + $0x8] sm:$0xff]
        %v397 = vld [vmem:[%s224 + $0x10] sm:$0xff]
        %v398 = vld [vmem:[%s224 + $0x18] sm:$0xff]
        %v399 = vld [vmem:[%s224 + $0x20] sm:$0xff]
        %v400 = vld [vmem:[%s224 + $0x28] sm:$0xff]
        %v401 = vld [vmem:[%s224 + $0x30] sm:$0xff]
        %v402 = vld [vmem:[%s224 + $0x38] sm:$0xff]
        %v403 = vld [vmem:[%s224 + $0x40] sm:$0xff]
        %v404 = vld [vmem:[%s224 + $0x48] sm:$0xff]
        %v405 = vld [vmem:[%s224 + $0x50] sm:$0xff]
        %v406 = vld [vmem:[%s224 + $0x58] sm:$0xff]
        %v407 = vld [vmem:[%s224 + $0x60] sm:$0xff]
        %v408 = vld [vmem:[%s224 + $0x68] sm:$0xff]
        %v409 = vld [vmem:[%s224 + $0x70] sm:$0xff]
        %v410 = vld [vmem:[%s224 + $0x78] sm:$0xff]
        %v411 = vunpack.c.0.s8 %v395
        %v412 = vunpack.c.0.s8 %v396
        %v413 = vunpack.c.1.s8 %v395
        %v414 = vunpack.c.1.s8 %v396
        %v415 = vunpack.c.2.s8 %v395
        %v416 = vunpack.c.2.s8 %v396
        %v417 = vunpack.c.3.s8 %v395
        %v418 = vunpack.c.3.s8 %v396
        %v419 = vunpack.c.0.s8 %v397
        %v420 = vunpack.c.0.s8 %v398
        %v421 = vunpack.c.1.s8 %v397
        %v422 = vunpack.c.1.s8 %v398
        %v423 = vunpack.c.2.s8 %v397
        %v424 = vunpack.c.2.s8 %v398
        %v425 = vunpack.c.3.s8 %v397
        %v426 = vunpack.c.3.s8 %v398
        %v427 = vunpack.c.0.s8 %v399
        %v428 = vunpack.c.0.s8 %v400
        %v429 = vunpack.c.1.s8 %v399
        %v430 = vunpack.c.1.s8 %v400
        %v431 = vunpack.c.2.s8 %v399
        %v432 = vunpack.c.2.s8 %v400
        %v433 = vunpack.c.3.s8 %v399
        %v434 = vunpack.c.3.s8 %v400
        %v435 = vunpack.c.0.s8 %v401
        %v436 = vunpack.c.0.s8 %v402
        %v437 = vunpack.c.1.s8 %v401
        %v438 = vunpack.c.1.s8 %v402
        %v439 = vunpack.c.2.s8 %v401
        %v440 = vunpack.c.2.s8 %v402
        %v441 = vunpack.c.3.s8 %v401
        %v442 = vunpack.c.3.s8 %v402
        %v443 = vunpack.c.0.s8 %v403
        %v444 = vunpack.c.0.s8 %v404
        %v445 = vunpack.c.1.s8 %v403
        %v446 = vunpack.c.1.s8 %v404
        %v447 = vunpack.c.2.s8 %v403
        %v448 = vunpack.c.2.s8 %v404
        %v449 = vunpack.c.3.s8 %v403
        %v450 = vunpack.c.3.s8 %v404
        %v451 = vunpack.c.0.s8 %v405
        %v452 = vunpack.c.0.s8 %v406
        %v453 = vunpack.c.1.s8 %v405
        %v454 = vunpack.c.1.s8 %v406
        %v455 = vunpack.c.2.s8 %v405
        %v456 = vunpack.c.2.s8 %v406
        %v457 = vunpack.c.3.s8 %v405
        %v458 = vunpack.c.3.s8 %v406
        %v459 = vunpack.c.0.s8 %v407
        %v460 = vunpack.c.0.s8 %v408
        %v461 = vunpack.c.1.s8 %v407
        %v462 = vunpack.c.1.s8 %v408
        %v463 = vunpack.c.2.s8 %v407
        %v464 = vunpack.c.2.s8 %v408
        %v465 = vunpack.c.3.s8 %v407
        %v466 = vunpack.c.3.s8 %v408
        %v467 = vunpack.c.0.s8 %v409
        %v468 = vunpack.c.0.s8 %v410
        %v469 = vunpack.c.1.s8 %v409
        %v470 = vunpack.c.1.s8 %v410
        %v471 = vunpack.c.2.s8 %v409
        %v472 = vunpack.c.2.s8 %v410
        %v473 = vunpack.c.3.s8 %v409
        %v474 = vunpack.c.3.s8 %v410
        %v475 = vcvt.s32.f32 %v411
        %v476 = vcvt.s32.f32 %v412
        %v477 = vcvt.s32.f32 %v413
        %v478 = vcvt.s32.f32 %v414
        %v479 = vcvt.s32.f32 %v415
        %v480 = vcvt.s32.f32 %v416
        %v481 = vcvt.s32.f32 %v417
        %v482 = vcvt.s32.f32 %v418
        %v483 = vcvt.s32.f32 %v419
        %v484 = vcvt.s32.f32 %v420
        %v485 = vcvt.s32.f32 %v421
        %v486 = vcvt.s32.f32 %v422
        %v487 = vcvt.s32.f32 %v423
        %v488 = vcvt.s32.f32 %v424
        %v489 = vcvt.s32.f32 %v425
        %v490 = vcvt.s32.f32 %v426
        %v491 = vcvt.s32.f32 %v427
        %v492 = vcvt.s32.f32 %v428
        %v493 = vcvt.s32.f32 %v429
        %v494 = vcvt.s32.f32 %v430
        %v495 = vcvt.s32.f32 %v431
        %v496 = vcvt.s32.f32 %v432
        %v497 = vcvt.s32.f32 %v433
        %v498 = vcvt.s32.f32 %v434
        %v499 = vcvt.s32.f32 %v435
        %v500 = vcvt.s32.f32 %v436
        %v501 = vcvt.s32.f32 %v437
        %v502 = vcvt.s32.f32 %v438
        %v503 = vcvt.s32.f32 %v439
        %v504 = vcvt.s32.f32 %v440
        %v505 = vcvt.s32.f32 %v441
        %v506 = vcvt.s32.f32 %v442
        %v507 = vcvt.s32.f32 %v443
        %v508 = vcvt.s32.f32 %v444
        %v509 = vcvt.s32.f32 %v445
        %v510 = vcvt.s32.f32 %v446
        %v511 = vcvt.s32.f32 %v447
        %v512 = vcvt.s32.f32 %v448
        %v513 = vcvt.s32.f32 %v449
        %v514 = vcvt.s32.f32 %v450
        %v515 = vcvt.s32.f32 %v451
        %v516 = vcvt.s32.f32 %v452
        %v517 = vcvt.s32.f32 %v453
        %v518 = vcvt.s32.f32 %v454
        %v519 = vcvt.s32.f32 %v455
        %v520 = vcvt.s32.f32 %v456
        %v521 = vcvt.s32.f32 %v457
        %v522 = vcvt.s32.f32 %v458
        %v523 = vcvt.s32.f32 %v459
        %v524 = vcvt.s32.f32 %v460
        %v525 = vcvt.s32.f32 %v461
        %v526 = vcvt.s32.f32 %v462
        %v527 = vcvt.s32.f32 %v463
        %v528 = vcvt.s32.f32 %v464
        %v529 = vcvt.s32.f32 %v465
        %v530 = vcvt.s32.f32 %v466
        %v531 = vcvt.s32.f32 %v467
        %v532 = vcvt.s32.f32 %v468
        %v533 = vcvt.s32.f32 %v469
        %v534 = vcvt.s32.f32 %v470
        %v535 = vcvt.s32.f32 %v471
        %v536 = vcvt.s32.f32 %v472
        %v537 = vcvt.s32.f32 %v473
        %v538 = vcvt.s32.f32 %v474
        %v539 = vpack.c.bf16 %v477, %v475
        %v540 = vpack.c.bf16 %v478, %v476
        %v541 = vpack.c.bf16 %v481, %v479
        %v542 = vpack.c.bf16 %v482, %v480
        %v543 = vpack.c.bf16 %v485, %v483
        %v544 = vpack.c.bf16 %v486, %v484
        %v545 = vpack.c.bf16 %v489, %v487
        %v546 = vpack.c.bf16 %v490, %v488
        %v547 = vpack.c.bf16 %v493, %v491
        %v548 = vpack.c.bf16 %v494, %v492
        %v549 = vpack.c.bf16 %v497, %v495
        %v550 = vpack.c.bf16 %v498, %v496
        %v551 = vpack.c.bf16 %v501, %v499
        %v552 = vpack.c.bf16 %v502, %v500
        %v553 = vpack.c.bf16 %v505, %v503
        %v554 = vpack.c.bf16 %v506, %v504
        %v555 = vpack.c.bf16 %v509, %v507
        %v556 = vpack.c.bf16 %v510, %v508
        %v557 = vpack.c.bf16 %v513, %v511
        %v558 = vpack.c.bf16 %v514, %v512
        %v559 = vpack.c.bf16 %v517, %v515
        %v560 = vpack.c.bf16 %v518, %v516
        %v561 = vpack.c.bf16 %v521, %v519
        %v562 = vpack.c.bf16 %v522, %v520
        %v563 = vpack.c.bf16 %v525, %v523
        %v564 = vpack.c.bf16 %v526, %v524
        %v565 = vpack.c.bf16 %v529, %v527
        %v566 = vpack.c.bf16 %v530, %v528
        %v567 = vpack.c.bf16 %v533, %v531
        %v568 = vpack.c.bf16 %v534, %v532
        %v569 = vpack.c.bf16 %v537, %v535
        %v570 = vpack.c.bf16 %v538, %v536
        %v571 = vld [vmem:[#allocation2] sm:$0xff]
        %v572 = vld [vmem:[#allocation2 + $0x8] sm:$0xff]
        %v573 = vld [vmem:[#allocation2 + $0x10] sm:$0xff]
        %v574 = vld [vmem:[#allocation2 + $0x18] sm:$0xff]
        %v575 = vld [vmem:[#allocation2 + $0x20] sm:$0xff]
        %v576 = vld [vmem:[#allocation2 + $0x28] sm:$0xff]
        %v577 = vld [vmem:[#allocation2 + $0x30] sm:$0xff]
        %v578 = vld [vmem:[#allocation2 + $0x38] sm:$0xff]
        %v579 = vld [vmem:[#allocation2 + $0x40] sm:$0xff]
        %v580 = vld [vmem:[#allocation2 + $0x48] sm:$0xff]
        %v581 = vld [vmem:[#allocation2 + $0x50] sm:$0xff]
        %v582 = vld [vmem:[#allocation2 + $0x58] sm:$0xff]
        %v583 = vld [vmem:[#allocation2 + $0x60] sm:$0xff]
        %v584 = vld [vmem:[#allocation2 + $0x68] sm:$0xff]
        %v585 = vld [vmem:[#allocation2 + $0x70] sm:$0xff]
        %v586 = vld [vmem:[#allocation2 + $0x78] sm:$0xff]
        %v587 = vld [vmem:[#allocation2 + $0x80] sm:$0xff]
        %v588 = vld [vmem:[#allocation2 + $0x88] sm:$0xff]
        %v589 = vld [vmem:[#allocation2 + $0x90] sm:$0xff]
        %v590 = vld [vmem:[#allocation2 + $0x98] sm:$0xff]
        %v591 = vld [vmem:[#allocation2 + $0xa0] sm:$0xff]
        %v592 = vld [vmem:[#allocation2 + $0xa8] sm:$0xff]
        %v593 = vld [vmem:[#allocation2 + $0xb0] sm:$0xff]
        %v594 = vld [vmem:[#allocation2 + $0xb8] sm:$0xff]
        %v595 = vld [vmem:[#allocation2 + $0xc0] sm:$0xff]
        %v596 = vld [vmem:[#allocation2 + $0xc8] sm:$0xff]
        %v597 = vld [vmem:[#allocation2 + $0xd0] sm:$0xff]
        %v598 = vld [vmem:[#allocation2 + $0xd8] sm:$0xff]
        %v599 = vld [vmem:[#allocation2 + $0xe0] sm:$0xff]
        %v600 = vld [vmem:[#allocation2 + $0xe8] sm:$0xff]
        %v601 = vld [vmem:[#allocation2 + $0xf0] sm:$0xff]
        %v602 = vld [vmem:[#allocation2 + $0xf8] sm:$0xff]
        %v603 = vunpack.c.l.bf16 %v539
        %v604 = vunpack.c.l.bf16 %v540
        %v605 = vunpack.c.h.bf16 %v539
        %v606 = vunpack.c.h.bf16 %v540
        %v607 = vunpack.c.l.bf16 %v541
        %v608 = vunpack.c.l.bf16 %v542
        %v609 = vunpack.c.h.bf16 %v541
        %v610 = vunpack.c.h.bf16 %v542
        %v611 = vunpack.c.l.bf16 %v543
        %v612 = vunpack.c.l.bf16 %v544
        %v613 = vunpack.c.h.bf16 %v543
        %v614 = vunpack.c.h.bf16 %v544
        %v615 = vunpack.c.l.bf16 %v545
        %v616 = vunpack.c.l.bf16 %v546
        %v617 = vunpack.c.h.bf16 %v545
        %v618 = vunpack.c.h.bf16 %v546
        %v619 = vunpack.c.l.bf16 %v547
        %v620 = vunpack.c.l.bf16 %v548
        %v621 = vunpack.c.h.bf16 %v547
        %v622 = vunpack.c.h.bf16 %v548
        %v623 = vunpack.c.l.bf16 %v549
        %v624 = vunpack.c.l.bf16 %v550
        %v625 = vunpack.c.h.bf16 %v549
        %v626 = vunpack.c.h.bf16 %v550
        %v627 = vunpack.c.l.bf16 %v551
        %v628 = vunpack.c.l.bf16 %v552
        %v629 = vunpack.c.h.bf16 %v551
        %v630 = vunpack.c.h.bf16 %v552
        %v631 = vunpack.c.l.bf16 %v553
        %v632 = vunpack.c.l.bf16 %v554
        %v633 = vunpack.c.h.bf16 %v553
        %v634 = vunpack.c.h.bf16 %v554
        %v635 = vunpack.c.l.bf16 %v555
        %v636 = vunpack.c.l.bf16 %v556
        %v637 = vunpack.c.h.bf16 %v555
        %v638 = vunpack.c.h.bf16 %v556
        %v639 = vunpack.c.l.bf16 %v557
        %v640 = vunpack.c.l.bf16 %v558
        %v641 = vunpack.c.h.bf16 %v557
        %v642 = vunpack.c.h.bf16 %v558
        %v643 = vunpack.c.l.bf16 %v559
        %v644 = vunpack.c.l.bf16 %v560
        %v645 = vunpack.c.h.bf16 %v559
        %v646 = vunpack.c.h.bf16 %v560
        %v647 = vunpack.c.l.bf16 %v561
        %v648 = vunpack.c.l.bf16 %v562
        %v649 = vunpack.c.h.bf16 %v561
        %v650 = vunpack.c.h.bf16 %v562
        %v651 = vunpack.c.l.bf16 %v563
        %v652 = vunpack.c.l.bf16 %v564
        %v653 = vunpack.c.h.bf16 %v563
        %v654 = vunpack.c.h.bf16 %v564
        %v655 = vunpack.c.l.bf16 %v565
        %v656 = vunpack.c.l.bf16 %v566
        %v657 = vunpack.c.h.bf16 %v565
        %v658 = vunpack.c.h.bf16 %v566
        %v659 = vunpack.c.l.bf16 %v567
        %v660 = vunpack.c.l.bf16 %v568
        %v661 = vunpack.c.h.bf16 %v567
        %v662 = vunpack.c.h.bf16 %v568
        %v663 = vunpack.c.l.bf16 %v569
        %v664 = vunpack.c.l.bf16 %v570
        %v665 = vunpack.c.h.bf16 %v569
        %v666 = vunpack.c.h.bf16 %v570
        %v667 = vadd.f32 %v603, %v604
        %668 = vadd.xlane.f32.xlu0 %v667
        %v669 = vpop.xlane.xlu0 %668
        %v670 = vadd.f32 %v605, %v606
        %671 = vadd.xlane.f32.xlu0 %v670
        %v672 = vpop.xlane.xlu0 %671
        %v673 = vadd.f32 %v607, %v608
        %674 = vadd.xlane.f32.xlu0 %v673
        %v675 = vpop.xlane.xlu0 %674
        %v676 = vadd.f32 %v609, %v610
        %677 = vadd.xlane.f32.xlu0 %v676
        %v678 = vpop.xlane.xlu0 %677
        %v679 = vadd.f32 %v611, %v612
        %680 = vadd.xlane.f32.xlu0 %v679
        %v681 = vpop.xlane.xlu0 %680
        %v682 = vadd.f32 %v613, %v614
        %683 = vadd.xlane.f32.xlu0 %v682
        %v684 = vpop.xlane.xlu0 %683
        %v685 = vadd.f32 %v615, %v616
        %686 = vadd.xlane.f32.xlu0 %v685
        %v687 = vpop.xlane.xlu0 %686
        %v688 = vadd.f32 %v617, %v618
        %689 = vadd.xlane.f32.xlu0 %v688
        %v690 = vpop.xlane.xlu0 %689
        %v691 = vadd.f32 %v619, %v620
        %692 = vadd.xlane.f32.xlu0 %v691
        %v693 = vpop.xlane.xlu0 %692
        %v694 = vadd.f32 %v621, %v622
        %695 = vadd.xlane.f32.xlu0 %v694
        %v696 = vpop.xlane.xlu0 %695
        %v697 = vadd.f32 %v623, %v624
        %698 = vadd.xlane.f32.xlu0 %v697
        %v699 = vpop.xlane.xlu0 %698
        %v700 = vadd.f32 %v625, %v626
        %701 = vadd.xlane.f32.xlu0 %v700
        %v702 = vpop.xlane.xlu0 %701
        %v703 = vadd.f32 %v627, %v628
        %704 = vadd.xlane.f32.xlu0 %v703
        %v705 = vpop.xlane.xlu0 %704
        %v706 = vadd.f32 %v629, %v630
        %707 = vadd.xlane.f32.xlu0 %v706
        %v708 = vpop.xlane.xlu0 %707
        %v709 = vadd.f32 %v631, %v632
        %710 = vadd.xlane.f32.xlu0 %v709
        %v711 = vpop.xlane.xlu0 %710
        %v712 = vadd.f32 %v633, %v634
        %713 = vadd.xlane.f32.xlu0 %v712
        %v714 = vpop.xlane.xlu0 %713
        %v715 = vadd.f32 %v635, %v636
        %716 = vadd.xlane.f32.xlu0 %v715
        %v717 = vpop.xlane.xlu0 %716
        %v718 = vadd.f32 %v637, %v638
        %719 = vadd.xlane.f32.xlu0 %v718
        %v720 = vpop.xlane.xlu0 %719
        %v721 = vadd.f32 %v639, %v640
        %722 = vadd.xlane.f32.xlu0 %v721
        %v723 = vpop.xlane.xlu0 %722
        %v724 = vadd.f32 %v641, %v642
        %725 = vadd.xlane.f32.xlu0 %v724
        %v726 = vpop.xlane.xlu0 %725
        %v727 = vadd.f32 %v643, %v644
        %728 = vadd.xlane.f32.xlu0 %v727
        %v729 = vpop.xlane.xlu0 %728
        %v730 = vadd.f32 %v645, %v646
        %731 = vadd.xlane.f32.xlu0 %v730
        %v732 = vpop.xlane.xlu0 %731
        %v733 = vadd.f32 %v647, %v648
        %734 = vadd.xlane.f32.xlu0 %v733
        %v735 = vpop.xlane.xlu0 %734
        %v736 = vadd.f32 %v649, %v650
        %737 = vadd.xlane.f32.xlu0 %v736
        %v738 = vpop.xlane.xlu0 %737
        %v739 = vadd.f32 %v651, %v652
        %740 = vadd.xlane.f32.xlu0 %v739
        %v741 = vpop.xlane.xlu0 %740
        %v742 = vadd.f32 %v653, %v654
        %743 = vadd.xlane.f32.xlu0 %v742
        %v744 = vpop.xlane.xlu0 %743
        %v745 = vadd.f32 %v655, %v656
        %746 = vadd.xlane.f32.xlu0 %v745
        %v747 = vpop.xlane.xlu0 %746
        %v748 = vadd.f32 %v657, %v658
        %749 = vadd.xlane.f32.xlu0 %v748
        %v750 = vpop.xlane.xlu0 %749
        %v751 = vadd.f32 %v659, %v660
        %752 = vadd.xlane.f32.xlu0 %v751
        %v753 = vpop.xlane.xlu0 %752
        %v754 = vadd.f32 %v661, %v662
        %755 = vadd.xlane.f32.xlu0 %v754
        %v756 = vpop.xlane.xlu0 %755
        %v757 = vadd.f32 %v663, %v664
        %758 = vadd.xlane.f32.xlu0 %v757
        %v759 = vpop.xlane.xlu0 %758
        %v760 = vadd.f32 %v665, %v666
        %761 = vadd.xlane.f32.xlu0 %v760
        %v762 = vpop.xlane.xlu0 %761
        %v763 = vadd.f32 %v571, %v669
        %v764 = vadd.f32 %v572, %v672
        %v765 = vadd.f32 %v573, %v675
        %v766 = vadd.f32 %v574, %v678
        %v767 = vadd.f32 %v575, %v681
        %v768 = vadd.f32 %v576, %v684
        %v769 = vadd.f32 %v577, %v687
        %v770 = vadd.f32 %v578, %v690
        %v771 = vadd.f32 %v579, %v693
        %v772 = vadd.f32 %v580, %v696
        %v773 = vadd.f32 %v581, %v699
        %v774 = vadd.f32 %v582, %v702
        %v775 = vadd.f32 %v583, %v705
        %v776 = vadd.f32 %v584, %v708
        %v777 = vadd.f32 %v585, %v711
        %v778 = vadd.f32 %v586, %v714
        %v779 = vadd.f32 %v587, %v717
        %v780 = vadd.f32 %v588, %v720
        %v781 = vadd.f32 %v589, %v723
        %v782 = vadd.f32 %v590, %v726
        %v783 = vadd.f32 %v591, %v729
        %v784 = vadd.f32 %v592, %v732
        %v785 = vadd.f32 %v593, %v735
        %v786 = vadd.f32 %v594, %v738
        %v787 = vadd.f32 %v595, %v741
        %v788 = vadd.f32 %v596, %v744
        %v789 = vadd.f32 %v597, %v747
        %v790 = vadd.f32 %v598, %v750
        %v791 = vadd.f32 %v599, %v753
        %v792 = vadd.f32 %v600, %v756
        %v793 = vadd.f32 %v601, %v759
        %v794 = vadd.f32 %v602, %v762
        %vm795 = vcmask 7168
        %796 = vst.msk [vmem:[#allocation2] sm:$0xff] %vm795, %v763
        %797 = vst.msk [vmem:[#allocation2 + $0x8] sm:$0xff] %vm795, %v764
        %798 = vst.msk [vmem:[#allocation2 + $0x10] sm:$0xff] %vm795, %v765
        %799 = vst.msk [vmem:[#allocation2 + $0x18] sm:$0xff] %vm795, %v766
        %800 = vst.msk [vmem:[#allocation2 + $0x20] sm:$0xff] %vm795, %v767
        %801 = vst.msk [vmem:[#allocation2 + $0x28] sm:$0xff] %vm795, %v768
        %802 = vst.msk [vmem:[#allocation2 + $0x30] sm:$0xff] %vm795, %v769
        %803 = vst.msk [vmem:[#allocation2 + $0x38] sm:$0xff] %vm795, %v770
        %804 = vst.msk [vmem:[#allocation2 + $0x40] sm:$0xff] %vm795, %v771
        %805 = vst.msk [vmem:[#allocation2 + $0x48] sm:$0xff] %vm795, %v772
        %806 = vst.msk [vmem:[#allocation2 + $0x50] sm:$0xff] %vm795, %v773
        %807 = vst.msk [vmem:[#allocation2 + $0x58] sm:$0xff] %vm795, %v774
        %808 = vst.msk [vmem:[#allocation2 + $0x60] sm:$0xff] %vm795, %v775
        %809 = vst.msk [vmem:[#allocation2 + $0x68] sm:$0xff] %vm795, %v776
        %810 = vst.msk [vmem:[#allocation2 + $0x70] sm:$0xff] %vm795, %v777
        %811 = vst.msk [vmem:[#allocation2 + $0x78] sm:$0xff] %vm795, %v778
        %812 = vst.msk [vmem:[#allocation2 + $0x80] sm:$0xff] %vm795, %v779
        %813 = vst.msk [vmem:[#allocation2 + $0x88] sm:$0xff] %vm795, %v780
        %814 = vst.msk [vmem:[#allocation2 + $0x90] sm:$0xff] %vm795, %v781
        %815 = vst.msk [vmem:[#allocation2 + $0x98] sm:$0xff] %vm795, %v782
        %816 = vst.msk [vmem:[#allocation2 + $0xa0] sm:$0xff] %vm795, %v783
        %817 = vst.msk [vmem:[#allocation2 + $0xa8] sm:$0xff] %vm795, %v784
        %818 = vst.msk [vmem:[#allocation2 + $0xb0] sm:$0xff] %vm795, %v785
        %819 = vst.msk [vmem:[#allocation2 + $0xb8] sm:$0xff] %vm795, %v786
        %820 = vst.msk [vmem:[#allocation2 + $0xc0] sm:$0xff] %vm795, %v787
        %821 = vst.msk [vmem:[#allocation2 + $0xc8] sm:$0xff] %vm795, %v788
        %822 = vst.msk [vmem:[#allocation2 + $0xd0] sm:$0xff] %vm795, %v789
        %823 = vst.msk [vmem:[#allocation2 + $0xd8] sm:$0xff] %vm795, %v790
        %824 = vst.msk [vmem:[#allocation2 + $0xe0] sm:$0xff] %vm795, %v791
        %825 = vst.msk [vmem:[#allocation2 + $0xe8] sm:$0xff] %vm795, %v792
        %826 = vst.msk [vmem:[#allocation2 + $0xf0] sm:$0xff] %vm795, %v793
        %827 = vst.msk [vmem:[#allocation2 + $0xf8] sm:$0xff] %vm795, %v794
        %s828 = sadd.s32 %s25, %s26
        %s829 = smul.u32 %s828, 32
        %s830 = smul.addr %s829, 4
        %s831 = scalar_lea.vmem [#allocation7], %s830
        %v832 = vld [vmem:[%s831] sm:$0xf]
        %v833 = vld [vmem:[%s831 + $0x4] sm:$0xf]
        %v834 = vld [vmem:[%s831 + $0x8] sm:$0xf]
        %v835 = vld [vmem:[%s831 + $0xc] sm:$0xf]
        %v836 = vld [vmem:[%s831 + $0x10] sm:$0xf]
        %v837 = vld [vmem:[%s831 + $0x14] sm:$0xf]
        %v838 = vld [vmem:[%s831 + $0x18] sm:$0xf]
        %v839 = vld [vmem:[%s831 + $0x1c] sm:$0xf]
        %v840 = vld [vmem:[%s831 + $0x20] sm:$0xf]
        %v841 = vld [vmem:[%s831 + $0x24] sm:$0xf]
        %v842 = vld [vmem:[%s831 + $0x28] sm:$0xf]
        %v843 = vld [vmem:[%s831 + $0x2c] sm:$0xf]
        %v844 = vld [vmem:[%s831 + $0x30] sm:$0xf]
        %v845 = vld [vmem:[%s831 + $0x34] sm:$0xf]
        %v846 = vld [vmem:[%s831 + $0x38] sm:$0xf]
        %v847 = vld [vmem:[%s831 + $0x3c] sm:$0xf]
        %v848 = vld [vmem:[%s831 + $0x40] sm:$0xf]
        %v849 = vld [vmem:[%s831 + $0x44] sm:$0xf]
        %v850 = vld [vmem:[%s831 + $0x48] sm:$0xf]
        %v851 = vld [vmem:[%s831 + $0x4c] sm:$0xf]
        %v852 = vld [vmem:[%s831 + $0x50] sm:$0xf]
        %v853 = vld [vmem:[%s831 + $0x54] sm:$0xf]
        %v854 = vld [vmem:[%s831 + $0x58] sm:$0xf]
        %v855 = vld [vmem:[%s831 + $0x5c] sm:$0xf]
        %v856 = vld [vmem:[%s831 + $0x60] sm:$0xf]
        %v857 = vld [vmem:[%s831 + $0x64] sm:$0xf]
        %v858 = vld [vmem:[%s831 + $0x68] sm:$0xf]
        %v859 = vld [vmem:[%s831 + $0x6c] sm:$0xf]
        %v860 = vld [vmem:[%s831 + $0x70] sm:$0xf]
        %v861 = vld [vmem:[%s831 + $0x74] sm:$0xf]
        %v862 = vld [vmem:[%s831 + $0x78] sm:$0xf]
        %v863 = vld [vmem:[%s831 + $0x7c] sm:$0xf]
        %v864 = vld [vmem:[#allocation3] sm:$0xff]
        %v865 = vld [vmem:[#allocation3 + $0x8] sm:$0xff]
        %v866 = vld [vmem:[#allocation3 + $0x10] sm:$0xff]
        %v867 = vld [vmem:[#allocation3 + $0x18] sm:$0xff]
        %v868 = vld [vmem:[#allocation3 + $0x20] sm:$0xff]
        %v869 = vld [vmem:[#allocation3 + $0x28] sm:$0xff]
        %v870 = vld [vmem:[#allocation3 + $0x30] sm:$0xff]
        %v871 = vld [vmem:[#allocation3 + $0x38] sm:$0xff]
        %v872 = vld [vmem:[#allocation3 + $0x40] sm:$0xff]
        %v873 = vld [vmem:[#allocation3 + $0x48] sm:$0xff]
        %v874 = vld [vmem:[#allocation3 + $0x50] sm:$0xff]
        %v875 = vld [vmem:[#allocation3 + $0x58] sm:$0xff]
        %v876 = vld [vmem:[#allocation3 + $0x60] sm:$0xff]
        %v877 = vld [vmem:[#allocation3 + $0x68] sm:$0xff]
        %v878 = vld [vmem:[#allocation3 + $0x70] sm:$0xff]
        %v879 = vld [vmem:[#allocation3 + $0x78] sm:$0xff]
        %v880 = vld [vmem:[#allocation3 + $0x80] sm:$0xff]
        %v881 = vld [vmem:[#allocation3 + $0x88] sm:$0xff]
        %v882 = vld [vmem:[#allocation3 + $0x90] sm:$0xff]
        %v883 = vld [vmem:[#allocation3 + $0x98] sm:$0xff]
        %v884 = vld [vmem:[#allocation3 + $0xa0] sm:$0xff]
        %v885 = vld [vmem:[#allocation3 + $0xa8] sm:$0xff]
        %v886 = vld [vmem:[#allocation3 + $0xb0] sm:$0xff]
        %v887 = vld [vmem:[#allocation3 + $0xb8] sm:$0xff]
        %v888 = vld [vmem:[#allocation3 + $0xc0] sm:$0xff]
        %v889 = vld [vmem:[#allocation3 + $0xc8] sm:$0xff]
        %v890 = vld [vmem:[#allocation3 + $0xd0] sm:$0xff]
        %v891 = vld [vmem:[#allocation3 + $0xd8] sm:$0xff]
        %v892 = vld [vmem:[#allocation3 + $0xe0] sm:$0xff]
        %v893 = vld [vmem:[#allocation3 + $0xe8] sm:$0xff]
        %v894 = vld [vmem:[#allocation3 + $0xf0] sm:$0xff]
        %v895 = vld [vmem:[#allocation3 + $0xf8] sm:$0xff]
        %v928 = vunpack.c.l.b16 %v832
        %v929 = vunpack.c.l.b16 %v833
        %v930 = vunpack.c.l.b16 %v834
        %v931 = vunpack.c.l.b16 %v835
        %v932 = vunpack.c.l.b16 %v836
        %v933 = vunpack.c.l.b16 %v837
        %v934 = vunpack.c.l.b16 %v838
        %v935 = vunpack.c.l.b16 %v839
        %v936 = vunpack.c.l.b16 %v840
        %v937 = vunpack.c.l.b16 %v841
        %v938 = vunpack.c.l.b16 %v842
        %v939 = vunpack.c.l.b16 %v843
        %v940 = vunpack.c.l.b16 %v844
        %v941 = vunpack.c.l.b16 %v845
        %v942 = vunpack.c.l.b16 %v846
        %v943 = vunpack.c.l.b16 %v847
        %v944 = vunpack.c.l.b16 %v848
        %v945 = vunpack.c.l.b16 %v849
        %v946 = vunpack.c.l.b16 %v850
        %v947 = vunpack.c.l.b16 %v851
        %v948 = vunpack.c.l.b16 %v852
        %v949 = vunpack.c.l.b16 %v853
        %v950 = vunpack.c.l.b16 %v854
        %v951 = vunpack.c.l.b16 %v855
        %v952 = vunpack.c.l.b16 %v856
        %v953 = vunpack.c.l.b16 %v857
        %v954 = vunpack.c.l.b16 %v858
        %v955 = vunpack.c.l.b16 %v859
        %v956 = vunpack.c.l.b16 %v860
        %v957 = vunpack.c.l.b16 %v861
        %v958 = vunpack.c.l.b16 %v862
        %v959 = vunpack.c.l.b16 %v863
        %v960 = vpack.c.b16 %v929, %v928
        %v961 = vpack.c.b16 %v931, %v930
        %v962 = vpack.c.b16 %v933, %v932
        %v963 = vpack.c.b16 %v935, %v934
        %v964 = vpack.c.b16 %v937, %v936
        %v965 = vpack.c.b16 %v939, %v938
        %v966 = vpack.c.b16 %v941, %v940
        %v967 = vpack.c.b16 %v943, %v942
        %v968 = vpack.c.b16 %v945, %v944
        %v969 = vpack.c.b16 %v947, %v946
        %v970 = vpack.c.b16 %v949, %v948
        %v971 = vpack.c.b16 %v951, %v950
        %v972 = vpack.c.b16 %v953, %v952
        %v973 = vpack.c.b16 %v955, %v954
        %v974 = vpack.c.b16 %v957, %v956
        %v975 = vpack.c.b16 %v959, %v958
        %992 = vmatpush.bf16.msra.mxu0 %v967
        %993 = vmatpush.bf16.msra.mxu0 %v966
        %994 = vmatpush.bf16.msra.mxu0 %v965
        %995 = vmatpush.bf16.msra.mxu0 %v964
        %996 = vmatpush.bf16.msra.mxu0 %v963
        %997 = vmatpush.bf16.msra.mxu0 %v962
        %998 = vmatpush.bf16.msra.mxu0 %v961
        %999 = vmatpush.bf16.msra.mxu0 %v960
        %1000 = vmatmul.bf16.gmra.mxu0 %v539
        %v1001 = vpop.f32.mrf.mxu0
        %v1002 = vadd.f32 0.0, %v1001
        %v1003 = vpop.f32.mrf.mxu0
        %v1004 = vadd.f32 0.0, %v1003
        %1005 = vmatmul.bf16.gmra.mxu0 %v541
        %v1006 = vpop.f32.mrf.mxu0
        %v1007 = vadd.f32 0.0, %v1006
        %v1008 = vpop.f32.mrf.mxu0
        %v1009 = vadd.f32 0.0, %v1008
        %1010 = vmatmul.bf16.gmra.mxu0 %v543
        %v1011 = vpop.f32.mrf.mxu0
        %v1012 = vadd.f32 0.0, %v1011
        %v1013 = vpop.f32.mrf.mxu0
        %v1014 = vadd.f32 0.0, %v1013
        %1015 = vmatmul.bf16.gmra.mxu0 %v545
        %v1016 = vpop.f32.mrf.mxu0
        %v1017 = vadd.f32 0.0, %v1016
        %v1018 = vpop.f32.mrf.mxu0
        %v1019 = vadd.f32 0.0, %v1018
        %1020 = vmatmul.bf16.gmra.mxu0 %v547
        %v1021 = vpop.f32.mrf.mxu0
        %v1022 = vadd.f32 0.0, %v1021
        %v1023 = vpop.f32.mrf.mxu0
        %v1024 = vadd.f32 0.0, %v1023
        %1025 = vmatmul.bf16.gmra.mxu0 %v549
        %v1026 = vpop.f32.mrf.mxu0
        %v1027 = vadd.f32 0.0, %v1026
        %v1028 = vpop.f32.mrf.mxu0
        %v1029 = vadd.f32 0.0, %v1028
        %1030 = vmatmul.bf16.gmra.mxu0 %v551
        %v1031 = vpop.f32.mrf.mxu0
        %v1032 = vadd.f32 0.0, %v1031
        %v1033 = vpop.f32.mrf.mxu0
        %v1034 = vadd.f32 0.0, %v1033
        %1035 = vmatmul.bf16.gmra.mxu0 %v553
        %v1036 = vpop.f32.mrf.mxu0
        %v1037 = vadd.f32 0.0, %v1036
        %v1038 = vpop.f32.mrf.mxu0
        %v1039 = vadd.f32 0.0, %v1038
        %1040 = vmatmul.bf16.gmra.mxu0 %v555
        %v1041 = vpop.f32.mrf.mxu0
        %v1042 = vadd.f32 0.0, %v1041
        %v1043 = vpop.f32.mrf.mxu0
        %v1044 = vadd.f32 0.0, %v1043
        %1045 = vmatmul.bf16.gmra.mxu0 %v557
        %v1046 = vpop.f32.mrf.mxu0
        %v1047 = vadd.f32 0.0, %v1046
        %v1048 = vpop.f32.mrf.mxu0
        %v1049 = vadd.f32 0.0, %v1048
        %1050 = vmatmul.bf16.gmra.mxu0 %v559
        %v1051 = vpop.f32.mrf.mxu0
        %v1052 = vadd.f32 0.0, %v1051
        %v1053 = vpop.f32.mrf.mxu0
        %v1054 = vadd.f32 0.0, %v1053
        %1055 = vmatmul.bf16.gmra.mxu0 %v561
        %v1056 = vpop.f32.mrf.mxu0
        %v1057 = vadd.f32 0.0, %v1056
        %v1058 = vpop.f32.mrf.mxu0
        %v1059 = vadd.f32 0.0, %v1058
        %1060 = vmatmul.bf16.gmra.mxu0 %v563
        %v1061 = vpop.f32.mrf.mxu0
        %v1062 = vadd.f32 0.0, %v1061
        %v1063 = vpop.f32.mrf.mxu0
        %v1064 = vadd.f32 0.0, %v1063
        %1065 = vmatmul.bf16.gmra.mxu0 %v565
        %v1066 = vpop.f32.mrf.mxu0
        %v1067 = vadd.f32 0.0, %v1066
        %v1068 = vpop.f32.mrf.mxu0
        %v1069 = vadd.f32 0.0, %v1068
        %1070 = vmatmul.bf16.gmra.mxu0 %v567
        %v1071 = vpop.f32.mrf.mxu0
        %v1072 = vadd.f32 0.0, %v1071
        %v1073 = vpop.f32.mrf.mxu0
        %v1074 = vadd.f32 0.0, %v1073
        %1075 = vmatmul.bf16.gmra.mxu0 %v569
        %v1076 = vpop.f32.mrf.mxu0
        %v1077 = vadd.f32 0.0, %v1076
        %v1078 = vpop.f32.mrf.mxu0
        %v1079 = vadd.f32 0.0, %v1078
        %1080 = vdwg.mxu0
        %1081 = vmatpush.bf16.msra.mxu0 %v975
        %1082 = vmatpush.bf16.msra.mxu0 %v974
        %1083 = vmatpush.bf16.msra.mxu0 %v973
        %1084 = vmatpush.bf16.msra.mxu0 %v972
        %1085 = vmatpush.bf16.msra.mxu0 %v971
        %1086 = vmatpush.bf16.msra.mxu0 %v970
        %1087 = vmatpush.bf16.msra.mxu0 %v969
        %1088 = vmatpush.bf16.msra.mxu0 %v968
        %1089 = vmatmul.bf16.gmra.mxu0 %v540
        %v1090 = vpop.f32.mrf.mxu0
        %v1091 = vadd.f32 %v1002, %v1090
        %v1092 = vpop.f32.mrf.mxu0
        %v1093 = vadd.f32 %v1004, %v1092
        %1094 = vmatmul.bf16.gmra.mxu0 %v542
        %v1095 = vpop.f32.mrf.mxu0
        %v1096 = vadd.f32 %v1007, %v1095
        %v1097 = vpop.f32.mrf.mxu0
        %v1098 = vadd.f32 %v1009, %v1097
        %1099 = vmatmul.bf16.gmra.mxu0 %v544
        %v1100 = vpop.f32.mrf.mxu0
        %v1101 = vadd.f32 %v1012, %v1100
        %v1102 = vpop.f32.mrf.mxu0
        %v1103 = vadd.f32 %v1014, %v1102
        %1104 = vmatmul.bf16.gmra.mxu0 %v546
        %v1105 = vpop.f32.mrf.mxu0
        %v1106 = vadd.f32 %v1017, %v1105
        %v1107 = vpop.f32.mrf.mxu0
        %v1108 = vadd.f32 %v1019, %v1107
        %1109 = vmatmul.bf16.gmra.mxu0 %v548
        %v1110 = vpop.f32.mrf.mxu0
        %v1111 = vadd.f32 %v1022, %v1110
        %v1112 = vpop.f32.mrf.mxu0
        %v1113 = vadd.f32 %v1024, %v1112
        %1114 = vmatmul.bf16.gmra.mxu0 %v550
        %v1115 = vpop.f32.mrf.mxu0
        %v1116 = vadd.f32 %v1027, %v1115
        %v1117 = vpop.f32.mrf.mxu0
        %v1118 = vadd.f32 %v1029, %v1117
        %1119 = vmatmul.bf16.gmra.mxu0 %v552
        %v1120 = vpop.f32.mrf.mxu0
        %v1121 = vadd.f32 %v1032, %v1120
        %v1122 = vpop.f32.mrf.mxu0
        %v1123 = vadd.f32 %v1034, %v1122
        %1124 = vmatmul.bf16.gmra.mxu0 %v554
        %v1125 = vpop.f32.mrf.mxu0
        %v1126 = vadd.f32 %v1037, %v1125
        %v1127 = vpop.f32.mrf.mxu0
        %v1128 = vadd.f32 %v1039, %v1127
        %1129 = vmatmul.bf16.gmra.mxu0 %v556
        %v1130 = vpop.f32.mrf.mxu0
        %v1131 = vadd.f32 %v1042, %v1130
        %v1132 = vpop.f32.mrf.mxu0
        %v1133 = vadd.f32 %v1044, %v1132
        %1134 = vmatmul.bf16.gmra.mxu0 %v558
        %v1135 = vpop.f32.mrf.mxu0
        %v1136 = vadd.f32 %v1047, %v1135
        %v1137 = vpop.f32.mrf.mxu0
        %v1138 = vadd.f32 %v1049, %v1137
        %1139 = vmatmul.bf16.gmra.mxu0 %v560
        %v1140 = vpop.f32.mrf.mxu0
        %v1141 = vadd.f32 %v1052, %v1140
        %v1142 = vpop.f32.mrf.mxu0
        %v1143 = vadd.f32 %v1054, %v1142
        %1144 = vmatmul.bf16.gmra.mxu0 %v562
        %v1145 = vpop.f32.mrf.mxu0
        %v1146 = vadd.f32 %v1057, %v1145
        %v1147 = vpop.f32.mrf.mxu0
        %v1148 = vadd.f32 %v1059, %v1147
        %1149 = vmatmul.bf16.gmra.mxu0 %v564
        %v1150 = vpop.f32.mrf.mxu0
        %v1151 = vadd.f32 %v1062, %v1150
        %v1152 = vpop.f32.mrf.mxu0
        %v1153 = vadd.f32 %v1064, %v1152
        %1154 = vmatmul.bf16.gmra.mxu0 %v566
        %v1155 = vpop.f32.mrf.mxu0
        %v1156 = vadd.f32 %v1067, %v1155
        %v1157 = vpop.f32.mrf.mxu0
        %v1158 = vadd.f32 %v1069, %v1157
        %1159 = vmatmul.bf16.gmra.mxu0 %v568
        %v1160 = vpop.f32.mrf.mxu0
        %v1161 = vadd.f32 %v1072, %v1160
        %v1162 = vpop.f32.mrf.mxu0
        %v1163 = vadd.f32 %v1074, %v1162
        %1164 = vmatmul.bf16.gmra.mxu0 %v570
        %v1165 = vpop.f32.mrf.mxu0
        %v1166 = vadd.f32 %v1077, %v1165
        %v1167 = vpop.f32.mrf.mxu0
        %v1168 = vadd.f32 %v1079, %v1167
        %1169 = vdwg.mxu0
        %v1170 = vadd.f32 %v864, %v1091
        %v1171 = vadd.f32 %v865, %v1093
        %v1172 = vadd.f32 %v866, %v1096
        %v1173 = vadd.f32 %v867, %v1098
        %v1174 = vadd.f32 %v868, %v1101
        %v1175 = vadd.f32 %v869, %v1103
        %v1176 = vadd.f32 %v870, %v1106
        %v1177 = vadd.f32 %v871, %v1108
        %v1178 = vadd.f32 %v872, %v1111
        %v1179 = vadd.f32 %v873, %v1113
        %v1180 = vadd.f32 %v874, %v1116
        %v1181 = vadd.f32 %v875, %v1118
        %v1182 = vadd.f32 %v876, %v1121
        %v1183 = vadd.f32 %v877, %v1123
        %v1184 = vadd.f32 %v878, %v1126
        %v1185 = vadd.f32 %v879, %v1128
        %v1186 = vadd.f32 %v880, %v1131
        %v1187 = vadd.f32 %v881, %v1133
        %v1188 = vadd.f32 %v882, %v1136
        %v1189 = vadd.f32 %v883, %v1138
        %v1190 = vadd.f32 %v884, %v1141
        %v1191 = vadd.f32 %v885, %v1143
        %v1192 = vadd.f32 %v886, %v1146
        %v1193 = vadd.f32 %v887, %v1148
        %v1194 = vadd.f32 %v888, %v1151
        %v1195 = vadd.f32 %v889, %v1153
        %v1196 = vadd.f32 %v890, %v1156
        %v1197 = vadd.f32 %v891, %v1158
        %v1198 = vadd.f32 %v892, %v1161
        %v1199 = vadd.f32 %v893, %v1163
        %v1200 = vadd.f32 %v894, %v1166
        %v1201 = vadd.f32 %v895, %v1168
        %1202 = vst [vmem:[#allocation3] sm:$0xff] %v1170
        %1203 = vst [vmem:[#allocation3 + $0x8] sm:$0xff] %v1171
        %1204 = vst [vmem:[#allocation3 + $0x10] sm:$0xff] %v1172
        %1205 = vst [vmem:[#allocation3 + $0x18] sm:$0xff] %v1173
        %1206 = vst [vmem:[#allocation3 + $0x20] sm:$0xff] %v1174
        %1207 = vst [vmem:[#allocation3 + $0x28] sm:$0xff] %v1175
        %1208 = vst [vmem:[#allocation3 + $0x30] sm:$0xff] %v1176
        %1209 = vst [vmem:[#allocation3 + $0x38] sm:$0xff] %v1177
        %1210 = vst [vmem:[#allocation3 + $0x40] sm:$0xff] %v1178
        %1211 = vst [vmem:[#allocation3 + $0x48] sm:$0xff] %v1179
        %1212 = vst [vmem:[#allocation3 + $0x50] sm:$0xff] %v1180
        %1213 = vst [vmem:[#allocation3 + $0x58] sm:$0xff] %v1181
        %1214 = vst [vmem:[#allocation3 + $0x60] sm:$0xff] %v1182
        %1215 = vst [vmem:[#allocation3 + $0x68] sm:$0xff] %v1183
        %1216 = vst [vmem:[#allocation3 + $0x70] sm:$0xff] %v1184
        %1217 = vst [vmem:[#allocation3 + $0x78] sm:$0xff] %v1185
        %1218 = vst [vmem:[#allocation3 + $0x80] sm:$0xff] %v1186
        %1219 = vst [vmem:[#allocation3 + $0x88] sm:$0xff] %v1187
        %1220 = vst [vmem:[#allocation3 + $0x90] sm:$0xff] %v1188
        %1221 = vst [vmem:[#allocation3 + $0x98] sm:$0xff] %v1189
        %1222 = vst [vmem:[#allocation3 + $0xa0] sm:$0xff] %v1190
        %1223 = vst [vmem:[#allocation3 + $0xa8] sm:$0xff] %v1191
        %1224 = vst [vmem:[#allocation3 + $0xb0] sm:$0xff] %v1192
        %1225 = vst [vmem:[#allocation3 + $0xb8] sm:$0xff] %v1193
        %1226 = vst [vmem:[#allocation3 + $0xc0] sm:$0xff] %v1194
        %1227 = vst [vmem:[#allocation3 + $0xc8] sm:$0xff] %v1195
        %1228 = vst [vmem:[#allocation3 + $0xd0] sm:$0xff] %v1196
        %1229 = vst [vmem:[#allocation3 + $0xd8] sm:$0xff] %v1197
        %1230 = vst [vmem:[#allocation3 + $0xe0] sm:$0xff] %v1198
        %1231 = vst [vmem:[#allocation3 + $0xe8] sm:$0xff] %v1199
        %1232 = vst [vmem:[#allocation3 + $0xf0] sm:$0xff] %v1200
        %1233 = vst [vmem:[#allocation3 + $0xf8] sm:$0xff] %v1201
        // Predicated region
        $region53: #{tpu_custom_call.1} parent=31 // pred_check
          %p1234 = pneg %p258
        $region54: #{tpu_custom_call.1} parent=31 // pred_check_branch
          %1236 = sbr.rel (%p1234) target = $region56
        $region55: #{tpu_custom_call.1} parent=31 // pred_region
          %v1237 = vld [vmem:[#allocation2] sm:$0xff]
          %v1238 = vld [vmem:[#allocation2 + $0x8] sm:$0xff]
          %v1239 = vld [vmem:[#allocation2 + $0x10] sm:$0xff]
          %v1240 = vld [vmem:[#allocation2 + $0x18] sm:$0xff]
          %v1241 = vld [vmem:[#allocation2 + $0x20] sm:$0xff]
          %v1242 = vld [vmem:[#allocation2 + $0x28] sm:$0xff]
          %v1243 = vld [vmem:[#allocation2 + $0x30] sm:$0xff]
          %v1244 = vld [vmem:[#allocation2 + $0x38] sm:$0xff]
          %v1245 = vld [vmem:[#allocation2 + $0x40] sm:$0xff]
          %v1246 = vld [vmem:[#allocation2 + $0x48] sm:$0xff]
          %v1247 = vld [vmem:[#allocation2 + $0x50] sm:$0xff]
          %v1248 = vld [vmem:[#allocation2 + $0x58] sm:$0xff]
          %v1249 = vld [vmem:[#allocation2 + $0x60] sm:$0xff]
          %v1250 = vld [vmem:[#allocation2 + $0x68] sm:$0xff]
          %v1251 = vld [vmem:[#allocation2 + $0x70] sm:$0xff]
          %v1252 = vld [vmem:[#allocation2 + $0x78] sm:$0xff]
          %v1253 = vld [vmem:[#allocation2 + $0x80] sm:$0xff]
          %v1254 = vld [vmem:[#allocation2 + $0x88] sm:$0xff]
          %v1255 = vld [vmem:[#allocation2 + $0x90] sm:$0xff]
          %v1256 = vld [vmem:[#allocation2 + $0x98] sm:$0xff]
          %v1257 = vld [vmem:[#allocation2 + $0xa0] sm:$0xff]
          %v1258 = vld [vmem:[#allocation2 + $0xa8] sm:$0xff]
          %v1259 = vld [vmem:[#allocation2 + $0xb0] sm:$0xff]
          %v1260 = vld [vmem:[#allocation2 + $0xb8] sm:$0xff]
          %v1261 = vld [vmem:[#allocation2 + $0xc0] sm:$0xff]
          %v1262 = vld [vmem:[#allocation2 + $0xc8] sm:$0xff]
          %v1263 = vld [vmem:[#allocation2 + $0xd0] sm:$0xff]
          %v1264 = vld [vmem:[#allocation2 + $0xd8] sm:$0xff]
          %v1265 = vld [vmem:[#allocation2 + $0xe0] sm:$0xff]
          %v1266 = vld [vmem:[#allocation2 + $0xe8] sm:$0xff]
          %v1267 = vld [vmem:[#allocation2 + $0xf0] sm:$0xff]
          %v1268 = vld [vmem:[#allocation2 + $0xf8] sm:$0xff]
          %v1269 = vmax.f32 %v1237, 1.0
          %v1270 = vmax.f32 %v1238, 1.0
          %v1271 = vmax.f32 %v1239, 1.0
          %v1272 = vmax.f32 %v1240, 1.0
          %v1273 = vmax.f32 %v1241, 1.0
          %v1274 = vmax.f32 %v1242, 1.0
          %v1275 = vmax.f32 %v1243, 1.0
          %v1276 = vmax.f32 %v1244, 1.0
          %v1277 = vmax.f32 %v1245, 1.0
          %v1278 = vmax.f32 %v1246, 1.0
          %v1279 = vmax.f32 %v1247, 1.0
          %v1280 = vmax.f32 %v1248, 1.0
          %v1281 = vmax.f32 %v1249, 1.0
          %v1282 = vmax.f32 %v1250, 1.0
          %v1283 = vmax.f32 %v1251, 1.0
          %v1284 = vmax.f32 %v1252, 1.0
          %v1285 = vmax.f32 %v1253, 1.0
          %v1286 = vmax.f32 %v1254, 1.0
          %v1287 = vmax.f32 %v1255, 1.0
          %v1288 = vmax.f32 %v1256, 1.0
          %v1289 = vmax.f32 %v1257, 1.0
          %v1290 = vmax.f32 %v1258, 1.0
          %v1291 = vmax.f32 %v1259, 1.0
          %v1292 = vmax.f32 %v1260, 1.0
          %v1293 = vmax.f32 %v1261, 1.0
          %v1294 = vmax.f32 %v1262, 1.0
          %v1295 = vmax.f32 %v1263, 1.0
          %v1296 = vmax.f32 %v1264, 1.0
          %v1297 = vmax.f32 %v1265, 1.0
          %v1298 = vmax.f32 %v1266, 1.0
          %v1299 = vmax.f32 %v1267, 1.0
          %v1300 = vmax.f32 %v1268, 1.0
          %v1301 = vrcp.pop %v1269
          %v1302 = vmul.f32 %v1269, %v1301
          %v1303 = vsub.f32 1.0, %v1302
          %v1304 = vmul.f32 %v1301, %v1303
          %v1305 = vadd.f32 %v1301, %v1304
          %vm1306 = vweird.f32 %v1269
          %vm1307 = vweird.f32 %v1301
          %vm1308 = vmor %vm1306, %vm1307
          %v1309 = vsel %vm1308, %v1301, %v1305
          %v1310 = vand.u32 2147483647, %v1269
          %vm1311 = vcmp.eq.f32.partialorder %v1310, 8.507059e+37
          %v1312 = vand.u32 %v1269, 2147483648
          %v1313 = vor.u32 1.1754944e-38, %v1312
          %v1314 = vsel %vm1311, %v1313, %v1309
          %v1315 = vmul.f32 1.0, %v1314
          %v1316 = vrcp.pop %v1270
          %v1317 = vmul.f32 %v1270, %v1316
          %v1318 = vsub.f32 1.0, %v1317
          %v1319 = vmul.f32 %v1316, %v1318
          %v1320 = vadd.f32 %v1316, %v1319
          %vm1321 = vweird.f32 %v1270
          %vm1322 = vweird.f32 %v1316
          %vm1323 = vmor %vm1321, %vm1322
          %v1324 = vsel %vm1323, %v1316, %v1320
          %v1325 = vand.u32 2147483647, %v1270
          %vm1326 = vcmp.eq.f32.partialorder %v1325, 8.507059e+37
          %v1327 = vand.u32 %v1270, 2147483648
          %v1328 = vor.u32 1.1754944e-38, %v1327
          %v1329 = vsel %vm1326, %v1328, %v1324
          %v1330 = vmul.f32 1.0, %v1329
          %v1331 = vrcp.pop %v1271
          %v1332 = vmul.f32 %v1271, %v1331
          %v1333 = vsub.f32 1.0, %v1332
          %v1334 = vmul.f32 %v1331, %v1333
          %v1335 = vadd.f32 %v1331, %v1334
          %vm1336 = vweird.f32 %v1271
          %vm1337 = vweird.f32 %v1331
          %vm1338 = vmor %vm1336, %vm1337
          %v1339 = vsel %vm1338, %v1331, %v1335
          %v1340 = vand.u32 2147483647, %v1271
          %vm1341 = vcmp.eq.f32.partialorder %v1340, 8.507059e+37
          %v1342 = vand.u32 %v1271, 2147483648
          %v1343 = vor.u32 1.1754944e-38, %v1342
          %v1344 = vsel %vm1341, %v1343, %v1339
          %v1345 = vmul.f32 1.0, %v1344
          %v1346 = vrcp.pop %v1272
          %v1347 = vmul.f32 %v1272, %v1346
          %v1348 = vsub.f32 1.0, %v1347
          %v1349 = vmul.f32 %v1346, %v1348
          %v1350 = vadd.f32 %v1346, %v1349
          %vm1351 = vweird.f32 %v1272
          %vm1352 = vweird.f32 %v1346
          %vm1353 = vmor %vm1351, %vm1352
          %v1354 = vsel %vm1353, %v1346, %v1350
          %v1355 = vand.u32 2147483647, %v1272
          %vm1356 = vcmp.eq.f32.partialorder %v1355, 8.507059e+37
          %v1357 = vand.u32 %v1272, 2147483648
          %v1358 = vor.u32 1.1754944e-38, %v1357
          %v1359 = vsel %vm1356, %v1358, %v1354
          %v1360 = vmul.f32 1.0, %v1359
          %v1361 = vrcp.pop %v1273
          %v1362 = vmul.f32 %v1273, %v1361
          %v1363 = vsub.f32 1.0, %v1362
          %v1364 = vmul.f32 %v1361, %v1363
          %v1365 = vadd.f32 %v1361, %v1364
          %vm1366 = vweird.f32 %v1273
          %vm1367 = vweird.f32 %v1361
          %vm1368 = vmor %vm1366, %vm1367
          %v1369 = vsel %vm1368, %v1361, %v1365
          %v1370 = vand.u32 2147483647, %v1273
          %vm1371 = vcmp.eq.f32.partialorder %v1370, 8.507059e+37
          %v1372 = vand.u32 %v1273, 2147483648
          %v1373 = vor.u32 1.1754944e-38, %v1372
          %v1374 = vsel %vm1371, %v1373, %v1369
          %v1375 = vmul.f32 1.0, %v1374
          %v1376 = vrcp.pop %v1274
          %v1377 = vmul.f32 %v1274, %v1376
          %v1378 = vsub.f32 1.0, %v1377
          %v1379 = vmul.f32 %v1376, %v1378
          %v1380 = vadd.f32 %v1376, %v1379
          %vm1381 = vweird.f32 %v1274
          %vm1382 = vweird.f32 %v1376
          %vm1383 = vmor %vm1381, %vm1382
          %v1384 = vsel %vm1383, %v1376, %v1380
          %v1385 = vand.u32 2147483647, %v1274
          %vm1386 = vcmp.eq.f32.partialorder %v1385, 8.507059e+37
          %v1387 = vand.u32 %v1274, 2147483648
          %v1388 = vor.u32 1.1754944e-38, %v1387
          %v1389 = vsel %vm1386, %v1388, %v1384
          %v1390 = vmul.f32 1.0, %v1389
          %v1391 = vrcp.pop %v1275
          %v1392 = vmul.f32 %v1275, %v1391
          %v1393 = vsub.f32 1.0, %v1392
          %v1394 = vmul.f32 %v1391, %v1393
          %v1395 = vadd.f32 %v1391, %v1394
          %vm1396 = vweird.f32 %v1275
          %vm1397 = vweird.f32 %v1391
          %vm1398 = vmor %vm1396, %vm1397
          %v1399 = vsel %vm1398, %v1391, %v1395
          %v1400 = vand.u32 2147483647, %v1275
          %vm1401 = vcmp.eq.f32.partialorder %v1400, 8.507059e+37
          %v1402 = vand.u32 %v1275, 2147483648
          %v1403 = vor.u32 1.1754944e-38, %v1402
          %v1404 = vsel %vm1401, %v1403, %v1399
          %v1405 = vmul.f32 1.0, %v1404
          %v1406 = vrcp.pop %v1276
          %v1407 = vmul.f32 %v1276, %v1406
          %v1408 = vsub.f32 1.0, %v1407
          %v1409 = vmul.f32 %v1406, %v1408
          %v1410 = vadd.f32 %v1406, %v1409
          %vm1411 = vweird.f32 %v1276
          %vm1412 = vweird.f32 %v1406
          %vm1413 = vmor %vm1411, %vm1412
          %v1414 = vsel %vm1413, %v1406, %v1410
          %v1415 = vand.u32 2147483647, %v1276
          %vm1416 = vcmp.eq.f32.partialorder %v1415, 8.507059e+37
          %v1417 = vand.u32 %v1276, 2147483648
          %v1418 = vor.u32 1.1754944e-38, %v1417
          %v1419 = vsel %vm1416, %v1418, %v1414
          %v1420 = vmul.f32 1.0, %v1419
          %v1421 = vrcp.pop %v1277
          %v1422 = vmul.f32 %v1277, %v1421
          %v1423 = vsub.f32 1.0, %v1422
          %v1424 = vmul.f32 %v1421, %v1423
          %v1425 = vadd.f32 %v1421, %v1424
          %vm1426 = vweird.f32 %v1277
          %vm1427 = vweird.f32 %v1421
          %vm1428 = vmor %vm1426, %vm1427
          %v1429 = vsel %vm1428, %v1421, %v1425
          %v1430 = vand.u32 2147483647, %v1277
          %vm1431 = vcmp.eq.f32.partialorder %v1430, 8.507059e+37
          %v1432 = vand.u32 %v1277, 2147483648
          %v1433 = vor.u32 1.1754944e-38, %v1432
          %v1434 = vsel %vm1431, %v1433, %v1429
          %v1435 = vmul.f32 1.0, %v1434
          %v1436 = vrcp.pop %v1278
          %v1437 = vmul.f32 %v1278, %v1436
          %v1438 = vsub.f32 1.0, %v1437
          %v1439 = vmul.f32 %v1436, %v1438
          %v1440 = vadd.f32 %v1436, %v1439
          %vm1441 = vweird.f32 %v1278
          %vm1442 = vweird.f32 %v1436
          %vm1443 = vmor %vm1441, %vm1442
          %v1444 = vsel %vm1443, %v1436, %v1440
          %v1445 = vand.u32 2147483647, %v1278
          %vm1446 = vcmp.eq.f32.partialorder %v1445, 8.507059e+37
          %v1447 = vand.u32 %v1278, 2147483648
          %v1448 = vor.u32 1.1754944e-38, %v1447
          %v1449 = vsel %vm1446, %v1448, %v1444
          %v1450 = vmul.f32 1.0, %v1449
          %v1451 = vrcp.pop %v1279
          %v1452 = vmul.f32 %v1279, %v1451
          %v1453 = vsub.f32 1.0, %v1452
          %v1454 = vmul.f32 %v1451, %v1453
          %v1455 = vadd.f32 %v1451, %v1454
          %vm1456 = vweird.f32 %v1279
          %vm1457 = vweird.f32 %v1451
          %vm1458 = vmor %vm1456, %vm1457
          %v1459 = vsel %vm1458, %v1451, %v1455
          %v1460 = vand.u32 2147483647, %v1279
          %vm1461 = vcmp.eq.f32.partialorder %v1460, 8.507059e+37
          %v1462 = vand.u32 %v1279, 2147483648
          %v1463 = vor.u32 1.1754944e-38, %v1462
          %v1464 = vsel %vm1461, %v1463, %v1459
          %v1465 = vmul.f32 1.0, %v1464
          %v1466 = vrcp.pop %v1280
          %v1467 = vmul.f32 %v1280, %v1466
          %v1468 = vsub.f32 1.0, %v1467
          %v1469 = vmul.f32 %v1466, %v1468
          %v1470 = vadd.f32 %v1466, %v1469
          %vm1471 = vweird.f32 %v1280
          %vm1472 = vweird.f32 %v1466
          %vm1473 = vmor %vm1471, %vm1472
          %v1474 = vsel %vm1473, %v1466, %v1470
          %v1475 = vand.u32 2147483647, %v1280
          %vm1476 = vcmp.eq.f32.partialorder %v1475, 8.507059e+37
          %v1477 = vand.u32 %v1280, 2147483648
          %v1478 = vor.u32 1.1754944e-38, %v1477
          %v1479 = vsel %vm1476, %v1478, %v1474
          %v1480 = vmul.f32 1.0, %v1479
          %v1481 = vrcp.pop %v1281
          %v1482 = vmul.f32 %v1281, %v1481
          %v1483 = vsub.f32 1.0, %v1482
          %v1484 = vmul.f32 %v1481, %v1483
          %v1485 = vadd.f32 %v1481, %v1484
          %vm1486 = vweird.f32 %v1281
          %vm1487 = vweird.f32 %v1481
          %vm1488 = vmor %vm1486, %vm1487
          %v1489 = vsel %vm1488, %v1481, %v1485
          %v1490 = vand.u32 2147483647, %v1281
          %vm1491 = vcmp.eq.f32.partialorder %v1490, 8.507059e+37
          %v1492 = vand.u32 %v1281, 2147483648
          %v1493 = vor.u32 1.1754944e-38, %v1492
          %v1494 = vsel %vm1491, %v1493, %v1489
          %v1495 = vmul.f32 1.0, %v1494
          %v1496 = vrcp.pop %v1282
          %v1497 = vmul.f32 %v1282, %v1496
          %v1498 = vsub.f32 1.0, %v1497
          %v1499 = vmul.f32 %v1496, %v1498
          %v1500 = vadd.f32 %v1496, %v1499
          %vm1501 = vweird.f32 %v1282
          %vm1502 = vweird.f32 %v1496
          %vm1503 = vmor %vm1501, %vm1502
          %v1504 = vsel %vm1503, %v1496, %v1500
          %v1505 = vand.u32 2147483647, %v1282
          %vm1506 = vcmp.eq.f32.partialorder %v1505, 8.507059e+37
          %v1507 = vand.u32 %v1282, 2147483648
          %v1508 = vor.u32 1.1754944e-38, %v1507
          %v1509 = vsel %vm1506, %v1508, %v1504
          %v1510 = vmul.f32 1.0, %v1509
          %v1511 = vrcp.pop %v1283
          %v1512 = vmul.f32 %v1283, %v1511
          %v1513 = vsub.f32 1.0, %v1512
          %v1514 = vmul.f32 %v1511, %v1513
          %v1515 = vadd.f32 %v1511, %v1514
          %vm1516 = vweird.f32 %v1283
          %vm1517 = vweird.f32 %v1511
          %vm1518 = vmor %vm1516, %vm1517
          %v1519 = vsel %vm1518, %v1511, %v1515
          %v1520 = vand.u32 2147483647, %v1283
          %vm1521 = vcmp.eq.f32.partialorder %v1520, 8.507059e+37
          %v1522 = vand.u32 %v1283, 2147483648
          %v1523 = vor.u32 1.1754944e-38, %v1522
          %v1524 = vsel %vm1521, %v1523, %v1519
          %v1525 = vmul.f32 1.0, %v1524
          %v1526 = vrcp.pop %v1284
          %v1527 = vmul.f32 %v1284, %v1526
          %v1528 = vsub.f32 1.0, %v1527
          %v1529 = vmul.f32 %v1526, %v1528
          %v1530 = vadd.f32 %v1526, %v1529
          %vm1531 = vweird.f32 %v1284
          %vm1532 = vweird.f32 %v1526
          %vm1533 = vmor %vm1531, %vm1532
          %v1534 = vsel %vm1533, %v1526, %v1530
          %v1535 = vand.u32 2147483647, %v1284
          %vm1536 = vcmp.eq.f32.partialorder %v1535, 8.507059e+37
          %v1537 = vand.u32 %v1284, 2147483648
          %v1538 = vor.u32 1.1754944e-38, %v1537
          %v1539 = vsel %vm1536, %v1538, %v1534
          %v1540 = vmul.f32 1.0, %v1539
          %v1541 = vrcp.pop %v1285
          %v1542 = vmul.f32 %v1285, %v1541
          %v1543 = vsub.f32 1.0, %v1542
          %v1544 = vmul.f32 %v1541, %v1543
          %v1545 = vadd.f32 %v1541, %v1544
          %vm1546 = vweird.f32 %v1285
          %vm1547 = vweird.f32 %v1541
          %vm1548 = vmor %vm1546, %vm1547
          %v1549 = vsel %vm1548, %v1541, %v1545
          %v1550 = vand.u32 2147483647, %v1285
          %vm1551 = vcmp.eq.f32.partialorder %v1550, 8.507059e+37
          %v1552 = vand.u32 %v1285, 2147483648
          %v1553 = vor.u32 1.1754944e-38, %v1552
          %v1554 = vsel %vm1551, %v1553, %v1549
          %v1555 = vmul.f32 1.0, %v1554
          %v1556 = vrcp.pop %v1286
          %v1557 = vmul.f32 %v1286, %v1556
          %v1558 = vsub.f32 1.0, %v1557
          %v1559 = vmul.f32 %v1556, %v1558
          %v1560 = vadd.f32 %v1556, %v1559
          %vm1561 = vweird.f32 %v1286
          %vm1562 = vweird.f32 %v1556
          %vm1563 = vmor %vm1561, %vm1562
          %v1564 = vsel %vm1563, %v1556, %v1560
          %v1565 = vand.u32 2147483647, %v1286
          %vm1566 = vcmp.eq.f32.partialorder %v1565, 8.507059e+37
          %v1567 = vand.u32 %v1286, 2147483648
          %v1568 = vor.u32 1.1754944e-38, %v1567
          %v1569 = vsel %vm1566, %v1568, %v1564
          %v1570 = vmul.f32 1.0, %v1569
          %v1571 = vrcp.pop %v1287
          %v1572 = vmul.f32 %v1287, %v1571
          %v1573 = vsub.f32 1.0, %v1572
          %v1574 = vmul.f32 %v1571, %v1573
          %v1575 = vadd.f32 %v1571, %v1574
          %vm1576 = vweird.f32 %v1287
          %vm1577 = vweird.f32 %v1571
          %vm1578 = vmor %vm1576, %vm1577
          %v1579 = vsel %vm1578, %v1571, %v1575
          %v1580 = vand.u32 2147483647, %v1287
          %vm1581 = vcmp.eq.f32.partialorder %v1580, 8.507059e+37
          %v1582 = vand.u32 %v1287, 2147483648
          %v1583 = vor.u32 1.1754944e-38, %v1582
          %v1584 = vsel %vm1581, %v1583, %v1579
          %v1585 = vmul.f32 1.0, %v1584
          %v1586 = vrcp.pop %v1288
          %v1587 = vmul.f32 %v1288, %v1586
          %v1588 = vsub.f32 1.0, %v1587
          %v1589 = vmul.f32 %v1586, %v1588
          %v1590 = vadd.f32 %v1586, %v1589
          %vm1591 = vweird.f32 %v1288
          %vm1592 = vweird.f32 %v1586
          %vm1593 = vmor %vm1591, %vm1592
          %v1594 = vsel %vm1593, %v1586, %v1590
          %v1595 = vand.u32 2147483647, %v1288
          %vm1596 = vcmp.eq.f32.partialorder %v1595, 8.507059e+37
          %v1597 = vand.u32 %v1288, 2147483648
          %v1598 = vor.u32 1.1754944e-38, %v1597
          %v1599 = vsel %vm1596, %v1598, %v1594
          %v1600 = vmul.f32 1.0, %v1599
          %v1601 = vrcp.pop %v1289
          %v1602 = vmul.f32 %v1289, %v1601
          %v1603 = vsub.f32 1.0, %v1602
          %v1604 = vmul.f32 %v1601, %v1603
          %v1605 = vadd.f32 %v1601, %v1604
          %vm1606 = vweird.f32 %v1289
          %vm1607 = vweird.f32 %v1601
          %vm1608 = vmor %vm1606, %vm1607
          %v1609 = vsel %vm1608, %v1601, %v1605
          %v1610 = vand.u32 2147483647, %v1289
          %vm1611 = vcmp.eq.f32.partialorder %v1610, 8.507059e+37
          %v1612 = vand.u32 %v1289, 2147483648
          %v1613 = vor.u32 1.1754944e-38, %v1612
          %v1614 = vsel %vm1611, %v1613, %v1609
          %v1615 = vmul.f32 1.0, %v1614
          %v1616 = vrcp.pop %v1290
          %v1617 = vmul.f32 %v1290, %v1616
          %v1618 = vsub.f32 1.0, %v1617
          %v1619 = vmul.f32 %v1616, %v1618
          %v1620 = vadd.f32 %v1616, %v1619
          %vm1621 = vweird.f32 %v1290
          %vm1622 = vweird.f32 %v1616
          %vm1623 = vmor %vm1621, %vm1622
          %v1624 = vsel %vm1623, %v1616, %v1620
          %v1625 = vand.u32 2147483647, %v1290
          %vm1626 = vcmp.eq.f32.partialorder %v1625, 8.507059e+37
          %v1627 = vand.u32 %v1290, 2147483648
          %v1628 = vor.u32 1.1754944e-38, %v1627
          %v1629 = vsel %vm1626, %v1628, %v1624
          %v1630 = vmul.f32 1.0, %v1629
          %v1631 = vrcp.pop %v1291
          %v1632 = vmul.f32 %v1291, %v1631
          %v1633 = vsub.f32 1.0, %v1632
          %v1634 = vmul.f32 %v1631, %v1633
          %v1635 = vadd.f32 %v1631, %v1634
          %vm1636 = vweird.f32 %v1291
          %vm1637 = vweird.f32 %v1631
          %vm1638 = vmor %vm1636, %vm1637
          %v1639 = vsel %vm1638, %v1631, %v1635
          %v1640 = vand.u32 2147483647, %v1291
          %vm1641 = vcmp.eq.f32.partialorder %v1640, 8.507059e+37
          %v1642 = vand.u32 %v1291, 2147483648
          %v1643 = vor.u32 1.1754944e-38, %v1642
          %v1644 = vsel %vm1641, %v1643, %v1639
          %v1645 = vmul.f32 1.0, %v1644
          %v1646 = vrcp.pop %v1292
          %v1647 = vmul.f32 %v1292, %v1646
          %v1648 = vsub.f32 1.0, %v1647
          %v1649 = vmul.f32 %v1646, %v1648
          %v1650 = vadd.f32 %v1646, %v1649
          %vm1651 = vweird.f32 %v1292
          %vm1652 = vweird.f32 %v1646
          %vm1653 = vmor %vm1651, %vm1652
          %v1654 = vsel %vm1653, %v1646, %v1650
          %v1655 = vand.u32 2147483647, %v1292
          %vm1656 = vcmp.eq.f32.partialorder %v1655, 8.507059e+37
          %v1657 = vand.u32 %v1292, 2147483648
          %v1658 = vor.u32 1.1754944e-38, %v1657
          %v1659 = vsel %vm1656, %v1658, %v1654
          %v1660 = vmul.f32 1.0, %v1659
          %v1661 = vrcp.pop %v1293
          %v1662 = vmul.f32 %v1293, %v1661
          %v1663 = vsub.f32 1.0, %v1662
          %v1664 = vmul.f32 %v1661, %v1663
          %v1665 = vadd.f32 %v1661, %v1664
          %vm1666 = vweird.f32 %v1293
          %vm1667 = vweird.f32 %v1661
          %vm1668 = vmor %vm1666, %vm1667
          %v1669 = vsel %vm1668, %v1661, %v1665
          %v1670 = vand.u32 2147483647, %v1293
          %vm1671 = vcmp.eq.f32.partialorder %v1670, 8.507059e+37
          %v1672 = vand.u32 %v1293, 2147483648
          %v1673 = vor.u32 1.1754944e-38, %v1672
          %v1674 = vsel %vm1671, %v1673, %v1669
          %v1675 = vmul.f32 1.0, %v1674
          %v1676 = vrcp.pop %v1294
          %v1677 = vmul.f32 %v1294, %v1676
          %v1678 = vsub.f32 1.0, %v1677
          %v1679 = vmul.f32 %v1676, %v1678
          %v1680 = vadd.f32 %v1676, %v1679
          %vm1681 = vweird.f32 %v1294
          %vm1682 = vweird.f32 %v1676
          %vm1683 = vmor %vm1681, %vm1682
          %v1684 = vsel %vm1683, %v1676, %v1680
          %v1685 = vand.u32 2147483647, %v1294
          %vm1686 = vcmp.eq.f32.partialorder %v1685, 8.507059e+37
          %v1687 = vand.u32 %v1294, 2147483648
          %v1688 = vor.u32 1.1754944e-38, %v1687
          %v1689 = vsel %vm1686, %v1688, %v1684
          %v1690 = vmul.f32 1.0, %v1689
          %v1691 = vrcp.pop %v1295
          %v1692 = vmul.f32 %v1295, %v1691
          %v1693 = vsub.f32 1.0, %v1692
          %v1694 = vmul.f32 %v1691, %v1693
          %v1695 = vadd.f32 %v1691, %v1694
          %vm1696 = vweird.f32 %v1295
          %vm1697 = vweird.f32 %v1691
          %vm1698 = vmor %vm1696, %vm1697
          %v1699 = vsel %vm1698, %v1691, %v1695
          %v1700 = vand.u32 2147483647, %v1295
          %vm1701 = vcmp.eq.f32.partialorder %v1700, 8.507059e+37
          %v1702 = vand.u32 %v1295, 2147483648
          %v1703 = vor.u32 1.1754944e-38, %v1702
          %v1704 = vsel %vm1701, %v1703, %v1699
          %v1705 = vmul.f32 1.0, %v1704
          %v1706 = vrcp.pop %v1296
          %v1707 = vmul.f32 %v1296, %v1706
          %v1708 = vsub.f32 1.0, %v1707
          %v1709 = vmul.f32 %v1706, %v1708
          %v1710 = vadd.f32 %v1706, %v1709
          %vm1711 = vweird.f32 %v1296
          %vm1712 = vweird.f32 %v1706
          %vm1713 = vmor %vm1711, %vm1712
          %v1714 = vsel %vm1713, %v1706, %v1710
          %v1715 = vand.u32 2147483647, %v1296
          %vm1716 = vcmp.eq.f32.partialorder %v1715, 8.507059e+37
          %v1717 = vand.u32 %v1296, 2147483648
          %v1718 = vor.u32 1.1754944e-38, %v1717
          %v1719 = vsel %vm1716, %v1718, %v1714
          %v1720 = vmul.f32 1.0, %v1719
          %v1721 = vrcp.pop %v1297
          %v1722 = vmul.f32 %v1297, %v1721
          %v1723 = vsub.f32 1.0, %v1722
          %v1724 = vmul.f32 %v1721, %v1723
          %v1725 = vadd.f32 %v1721, %v1724
          %vm1726 = vweird.f32 %v1297
          %vm1727 = vweird.f32 %v1721
          %vm1728 = vmor %vm1726, %vm1727
          %v1729 = vsel %vm1728, %v1721, %v1725
          %v1730 = vand.u32 2147483647, %v1297
          %vm1731 = vcmp.eq.f32.partialorder %v1730, 8.507059e+37
          %v1732 = vand.u32 %v1297, 2147483648
          %v1733 = vor.u32 1.1754944e-38, %v1732
          %v1734 = vsel %vm1731, %v1733, %v1729
          %v1735 = vmul.f32 1.0, %v1734
          %v1736 = vrcp.pop %v1298
          %v1737 = vmul.f32 %v1298, %v1736
          %v1738 = vsub.f32 1.0, %v1737
          %v1739 = vmul.f32 %v1736, %v1738
          %v1740 = vadd.f32 %v1736, %v1739
          %vm1741 = vweird.f32 %v1298
          %vm1742 = vweird.f32 %v1736
          %vm1743 = vmor %vm1741, %vm1742
          %v1744 = vsel %vm1743, %v1736, %v1740
          %v1745 = vand.u32 2147483647, %v1298
          %vm1746 = vcmp.eq.f32.partialorder %v1745, 8.507059e+37
          %v1747 = vand.u32 %v1298, 2147483648
          %v1748 = vor.u32 1.1754944e-38, %v1747
          %v1749 = vsel %vm1746, %v1748, %v1744
          %v1750 = vmul.f32 1.0, %v1749
          %v1751 = vrcp.pop %v1299
          %v1752 = vmul.f32 %v1299, %v1751
          %v1753 = vsub.f32 1.0, %v1752
          %v1754 = vmul.f32 %v1751, %v1753
          %v1755 = vadd.f32 %v1751, %v1754
          %vm1756 = vweird.f32 %v1299
          %vm1757 = vweird.f32 %v1751
          %vm1758 = vmor %vm1756, %vm1757
          %v1759 = vsel %vm1758, %v1751, %v1755
          %v1760 = vand.u32 2147483647, %v1299
          %vm1761 = vcmp.eq.f32.partialorder %v1760, 8.507059e+37
          %v1762 = vand.u32 %v1299, 2147483648
          %v1763 = vor.u32 1.1754944e-38, %v1762
          %v1764 = vsel %vm1761, %v1763, %v1759
          %v1765 = vmul.f32 1.0, %v1764
          %v1766 = vrcp.pop %v1300
          %v1767 = vmul.f32 %v1300, %v1766
          %v1768 = vsub.f32 1.0, %v1767
          %v1769 = vmul.f32 %v1766, %v1768
          %v1770 = vadd.f32 %v1766, %v1769
          %vm1771 = vweird.f32 %v1300
          %vm1772 = vweird.f32 %v1766
          %vm1773 = vmor %vm1771, %vm1772
          %v1774 = vsel %vm1773, %v1766, %v1770
          %v1775 = vand.u32 2147483647, %v1300
          %vm1776 = vcmp.eq.f32.partialorder %v1775, 8.507059e+37
          %v1777 = vand.u32 %v1300, 2147483648
          %v1778 = vor.u32 1.1754944e-38, %v1777
          %v1779 = vsel %vm1776, %v1778, %v1774
          %v1780 = vmul.f32 1.0, %v1779
          %v1781 = vld [vmem:[#allocation10] sm:$0xff]
          %v1782 = vld [vmem:[#allocation10 + $0x8] sm:$0xff]
          %v1783 = vld [vmem:[#allocation10 + $0x10] sm:$0xff]
          %v1784 = vld [vmem:[#allocation10 + $0x18] sm:$0xff]
          %v1785 = vld [vmem:[#allocation10 + $0x20] sm:$0xff]
          %v1786 = vld [vmem:[#allocation10 + $0x28] sm:$0xff]
          %v1787 = vld [vmem:[#allocation10 + $0x30] sm:$0xff]
          %v1788 = vld [vmem:[#allocation10 + $0x38] sm:$0xff]
          %v1789 = vld [vmem:[#allocation10 + $0x40] sm:$0xff]
          %v1790 = vld [vmem:[#allocation10 + $0x48] sm:$0xff]
          %v1791 = vld [vmem:[#allocation10 + $0x50] sm:$0xff]
          %v1792 = vld [vmem:[#allocation10 + $0x58] sm:$0xff]
          %v1793 = vld [vmem:[#allocation10 + $0x60] sm:$0xff]
          %v1794 = vld [vmem:[#allocation10 + $0x68] sm:$0xff]
          %v1795 = vld [vmem:[#allocation10 + $0x70] sm:$0xff]
          %v1796 = vld [vmem:[#allocation10 + $0x78] sm:$0xff]
          %v1797 = vld [vmem:[#allocation10 + $0x80] sm:$0xff]
          %v1798 = vld [vmem:[#allocation10 + $0x88] sm:$0xff]
          %v1799 = vld [vmem:[#allocation10 + $0x90] sm:$0xff]
          %v1800 = vld [vmem:[#allocation10 + $0x98] sm:$0xff]
          %v1801 = vld [vmem:[#allocation10 + $0xa0] sm:$0xff]
          %v1802 = vld [vmem:[#allocation10 + $0xa8] sm:$0xff]
          %v1803 = vld [vmem:[#allocation10 + $0xb0] sm:$0xff]
          %v1804 = vld [vmem:[#allocation10 + $0xb8] sm:$0xff]
          %v1805 = vld [vmem:[#allocation10 + $0xc0] sm:$0xff]
          %v1806 = vld [vmem:[#allocation10 + $0xc8] sm:$0xff]
          %v1807 = vld [vmem:[#allocation10 + $0xd0] sm:$0xff]
          %v1808 = vld [vmem:[#allocation10 + $0xd8] sm:$0xff]
          %v1809 = vld [vmem:[#allocation10 + $0xe0] sm:$0xff]
          %v1810 = vld [vmem:[#allocation10 + $0xe8] sm:$0xff]
          %v1811 = vld [vmem:[#allocation10 + $0xf0] sm:$0xff]
          %v1812 = vld [vmem:[#allocation10 + $0xf8] sm:$0xff]
          %v1813 = vld [vmem:[#allocation3] sm:$0xff]
          %v1814 = vld [vmem:[#allocation3 + $0x8] sm:$0xff]
          %v1815 = vld [vmem:[#allocation3 + $0x10] sm:$0xff]
          %v1816 = vld [vmem:[#allocation3 + $0x18] sm:$0xff]
          %v1817 = vld [vmem:[#allocation3 + $0x20] sm:$0xff]
          %v1818 = vld [vmem:[#allocation3 + $0x28] sm:$0xff]
          %v1819 = vld [vmem:[#allocation3 + $0x30] sm:$0xff]
          %v1820 = vld [vmem:[#allocation3 + $0x38] sm:$0xff]
          %v1821 = vld [vmem:[#allocation3 + $0x40] sm:$0xff]
          %v1822 = vld [vmem:[#allocation3 + $0x48] sm:$0xff]
          %v1823 = vld [vmem:[#allocation3 + $0x50] sm:$0xff]
          %v1824 = vld [vmem:[#allocation3 + $0x58] sm:$0xff]
          %v1825 = vld [vmem:[#allocation3 + $0x60] sm:$0xff]
          %v1826 = vld [vmem:[#allocation3 + $0x68] sm:$0xff]
          %v1827 = vld [vmem:[#allocation3 + $0x70] sm:$0xff]
          %v1828 = vld [vmem:[#allocation3 + $0x78] sm:$0xff]
          %v1829 = vld [vmem:[#allocation3 + $0x80] sm:$0xff]
          %v1830 = vld [vmem:[#allocation3 + $0x88] sm:$0xff]
          %v1831 = vld [vmem:[#allocation3 + $0x90] sm:$0xff]
          %v1832 = vld [vmem:[#allocation3 + $0x98] sm:$0xff]
          %v1833 = vld [vmem:[#allocation3 + $0xa0] sm:$0xff]
          %v1834 = vld [vmem:[#allocation3 + $0xa8] sm:$0xff]
          %v1835 = vld [vmem:[#allocation3 + $0xb0] sm:$0xff]
          %v1836 = vld [vmem:[#allocation3 + $0xb8] sm:$0xff]
          %v1837 = vld [vmem:[#allocation3 + $0xc0] sm:$0xff]
          %v1838 = vld [vmem:[#allocation3 + $0xc8] sm:$0xff]
          %v1839 = vld [vmem:[#allocation3 + $0xd0] sm:$0xff]
          %v1840 = vld [vmem:[#allocation3 + $0xd8] sm:$0xff]
          %v1841 = vld [vmem:[#allocation3 + $0xe0] sm:$0xff]
          %v1842 = vld [vmem:[#allocation3 + $0xe8] sm:$0xff]
          %v1843 = vld [vmem:[#allocation3 + $0xf0] sm:$0xff]
          %v1844 = vld [vmem:[#allocation3 + $0xf8] sm:$0xff]
          %1846 = vset.pattern.permute.xlu0 0
          %1847 = vperm.xlu0 %1846, %v1315
          %v1848 = vpop.permute.xlu0 %1847
          %1851 = vset.pattern.permute.xlu0 0
          %1852 = vperm.xlu0 %1851, %v1330
          %v1853 = vpop.permute.xlu0 %1852
          %1856 = vset.pattern.permute.xlu0 0
          %1857 = vperm.xlu0 %1856, %v1345
          %v1858 = vpop.permute.xlu0 %1857
          %1861 = vset.pattern.permute.xlu0 0
          %1862 = vperm.xlu0 %1861, %v1360
          %v1863 = vpop.permute.xlu0 %1862
          %1866 = vset.pattern.permute.xlu0 0
          %1867 = vperm.xlu0 %1866, %v1375
          %v1868 = vpop.permute.xlu0 %1867
          %1871 = vset.pattern.permute.xlu0 0
          %1872 = vperm.xlu0 %1871, %v1390
          %v1873 = vpop.permute.xlu0 %1872
          %1876 = vset.pattern.permute.xlu0 0
          %1877 = vperm.xlu0 %1876, %v1405
          %v1878 = vpop.permute.xlu0 %1877
          %1881 = vset.pattern.permute.xlu0 0
          %1882 = vperm.xlu0 %1881, %v1420
          %v1883 = vpop.permute.xlu0 %1882
          %1886 = vset.pattern.permute.xlu0 0
          %1887 = vperm.xlu0 %1886, %v1435
          %v1888 = vpop.permute.xlu0 %1887
          %1891 = vset.pattern.permute.xlu0 0
          %1892 = vperm.xlu0 %1891, %v1450
          %v1893 = vpop.permute.xlu0 %1892
          %1896 = vset.pattern.permute.xlu0 0
          %1897 = vperm.xlu0 %1896, %v1465
          %v1898 = vpop.permute.xlu0 %1897
          %1901 = vset.pattern.permute.xlu0 0
          %1902 = vperm.xlu0 %1901, %v1480
          %v1903 = vpop.permute.xlu0 %1902
          %1906 = vset.pattern.permute.xlu0 0
          %1907 = vperm.xlu0 %1906, %v1495
          %v1908 = vpop.permute.xlu0 %1907
          %1911 = vset.pattern.permute.xlu0 0
          %1912 = vperm.xlu0 %1911, %v1510
          %v1913 = vpop.permute.xlu0 %1912
          %1916 = vset.pattern.permute.xlu0 0
          %1917 = vperm.xlu0 %1916, %v1525
          %v1918 = vpop.permute.xlu0 %1917
          %1921 = vset.pattern.permute.xlu0 0
          %1922 = vperm.xlu0 %1921, %v1540
          %v1923 = vpop.permute.xlu0 %1922
          %1926 = vset.pattern.permute.xlu0 0
          %1927 = vperm.xlu0 %1926, %v1555
          %v1928 = vpop.permute.xlu0 %1927
          %1931 = vset.pattern.permute.xlu0 0
          %1932 = vperm.xlu0 %1931, %v1570
          %v1933 = vpop.permute.xlu0 %1932
          %1936 = vset.pattern.permute.xlu0 0
          %1937 = vperm.xlu0 %1936, %v1585
          %v1938 = vpop.permute.xlu0 %1937
          %1941 = vset.pattern.permute.xlu0 0
          %1942 = vperm.xlu0 %1941, %v1600
          %v1943 = vpop.permute.xlu0 %1942
          %1946 = vset.pattern.permute.xlu0 0
          %1947 = vperm.xlu0 %1946, %v1615
          %v1948 = vpop.permute.xlu0 %1947
          %1951 = vset.pattern.permute.xlu0 0
          %1952 = vperm.xlu0 %1951, %v1630
          %v1953 = vpop.permute.xlu0 %1952
          %1956 = vset.pattern.permute.xlu0 0
          %1957 = vperm.xlu0 %1956, %v1645
          %v1958 = vpop.permute.xlu0 %1957
          %1961 = vset.pattern.permute.xlu0 0
          %1962 = vperm.xlu0 %1961, %v1660
          %v1963 = vpop.permute.xlu0 %1962
          %1966 = vset.pattern.permute.xlu0 0
          %1967 = vperm.xlu0 %1966, %v1675
          %v1968 = vpop.permute.xlu0 %1967
          %1971 = vset.pattern.permute.xlu0 0
          %1972 = vperm.xlu0 %1971, %v1690
          %v1973 = vpop.permute.xlu0 %1972
          %1976 = vset.pattern.permute.xlu0 0
          %1977 = vperm.xlu0 %1976, %v1705
          %v1978 = vpop.permute.xlu0 %1977
          %1981 = vset.pattern.permute.xlu0 0
          %1982 = vperm.xlu0 %1981, %v1720
          %v1983 = vpop.permute.xlu0 %1982
          %1986 = vset.pattern.permute.xlu0 0
          %1987 = vperm.xlu0 %1986, %v1735
          %v1988 = vpop.permute.xlu0 %1987
          %1991 = vset.pattern.permute.xlu0 0
          %1992 = vperm.xlu0 %1991, %v1750
          %v1993 = vpop.permute.xlu0 %1992
          %1996 = vset.pattern.permute.xlu0 0
          %1997 = vperm.xlu0 %1996, %v1765
          %v1998 = vpop.permute.xlu0 %1997
          %2001 = vset.pattern.permute.xlu0 0
          %2002 = vperm.xlu0 %2001, %v1780
          %v2003 = vpop.permute.xlu0 %2002
          %v2005 = vmul.f32 %v1813, %v1848
          %v2006 = vmul.f32 %v1814, %v1853
          %v2007 = vmul.f32 %v1815, %v1858
          %v2008 = vmul.f32 %v1816, %v1863
          %v2009 = vmul.f32 %v1817, %v1868
          %v2010 = vmul.f32 %v1818, %v1873
          %v2011 = vmul.f32 %v1819, %v1878
          %v2012 = vmul.f32 %v1820, %v1883
          %v2013 = vmul.f32 %v1821, %v1888
          %v2014 = vmul.f32 %v1822, %v1893
          %v2015 = vmul.f32 %v1823, %v1898
          %v2016 = vmul.f32 %v1824, %v1903
          %v2017 = vmul.f32 %v1825, %v1908
          %v2018 = vmul.f32 %v1826, %v1913
          %v2019 = vmul.f32 %v1827, %v1918
          %v2020 = vmul.f32 %v1828, %v1923
          %v2021 = vmul.f32 %v1829, %v1928
          %v2022 = vmul.f32 %v1830, %v1933
          %v2023 = vmul.f32 %v1831, %v1938
          %v2024 = vmul.f32 %v1832, %v1943
          %v2025 = vmul.f32 %v1833, %v1948
          %v2026 = vmul.f32 %v1834, %v1953
          %v2027 = vmul.f32 %v1835, %v1958
          %v2028 = vmul.f32 %v1836, %v1963
          %v2029 = vmul.f32 %v1837, %v1968
          %v2030 = vmul.f32 %v1838, %v1973
          %v2031 = vmul.f32 %v1839, %v1978
          %v2032 = vmul.f32 %v1840, %v1983
          %v2033 = vmul.f32 %v1841, %v1988
          %v2034 = vmul.f32 %v1842, %v1993
          %v2035 = vmul.f32 %v1843, %v1998
          %v2036 = vmul.f32 %v1844, %v2003
          %v2037 = vadd.f32 %v1781, %v2005
          %v2038 = vadd.f32 %v1782, %v2006
          %v2039 = vadd.f32 %v1783, %v2007
          %v2040 = vadd.f32 %v1784, %v2008
          %v2041 = vadd.f32 %v1785, %v2009
          %v2042 = vadd.f32 %v1786, %v2010
          %v2043 = vadd.f32 %v1787, %v2011
          %v2044 = vadd.f32 %v1788, %v2012
          %v2045 = vadd.f32 %v1789, %v2013
          %v2046 = vadd.f32 %v1790, %v2014
          %v2047 = vadd.f32 %v1791, %v2015
          %v2048 = vadd.f32 %v1792, %v2016
          %v2049 = vadd.f32 %v1793, %v2017
          %v2050 = vadd.f32 %v1794, %v2018
          %v2051 = vadd.f32 %v1795, %v2019
          %v2052 = vadd.f32 %v1796, %v2020
          %v2053 = vadd.f32 %v1797, %v2021
          %v2054 = vadd.f32 %v1798, %v2022
          %v2055 = vadd.f32 %v1799, %v2023
          %v2056 = vadd.f32 %v1800, %v2024
          %v2057 = vadd.f32 %v1801, %v2025
          %v2058 = vadd.f32 %v1802, %v2026
          %v2059 = vadd.f32 %v1803, %v2027
          %v2060 = vadd.f32 %v1804, %v2028
          %v2061 = vadd.f32 %v1805, %v2029
          %v2062 = vadd.f32 %v1806, %v2030
          %v2063 = vadd.f32 %v1807, %v2031
          %v2064 = vadd.f32 %v1808, %v2032
          %v2065 = vadd.f32 %v1809, %v2033
          %v2066 = vadd.f32 %v1810, %v2034
          %v2067 = vadd.f32 %v1811, %v2035
          %v2068 = vadd.f32 %v1812, %v2036
          %2069 = vst [vmem:[#allocation10] sm:$0xff] %v2037
          %2070 = vst [vmem:[#allocation10 + $0x8] sm:$0xff] %v2038
          %2071 = vst [vmem:[#allocation10 + $0x10] sm:$0xff] %v2039
          %2072 = vst [vmem:[#allocation10 + $0x18] sm:$0xff] %v2040
          %2073 = vst [vmem:[#allocation10 + $0x20] sm:$0xff] %v2041
          %2074 = vst [vmem:[#allocation10 + $0x28] sm:$0xff] %v2042
          %2075 = vst [vmem:[#allocation10 + $0x30] sm:$0xff] %v2043
          %2076 = vst [vmem:[#allocation10 + $0x38] sm:$0xff] %v2044
          %2077 = vst [vmem:[#allocation10 + $0x40] sm:$0xff] %v2045
          %2078 = vst [vmem:[#allocation10 + $0x48] sm:$0xff] %v2046
          %2079 = vst [vmem:[#allocation10 + $0x50] sm:$0xff] %v2047
          %2080 = vst [vmem:[#allocation10 + $0x58] sm:$0xff] %v2048
          %2081 = vst [vmem:[#allocation10 + $0x60] sm:$0xff] %v2049
          %2082 = vst [vmem:[#allocation10 + $0x68] sm:$0xff] %v2050
          %2083 = vst [vmem:[#allocation10 + $0x70] sm:$0xff] %v2051
          %2084 = vst [vmem:[#allocation10 + $0x78] sm:$0xff] %v2052
          %2085 = vst [vmem:[#allocation10 + $0x80] sm:$0xff] %v2053
          %2086 = vst [vmem:[#allocation10 + $0x88] sm:$0xff] %v2054
          %2087 = vst [vmem:[#allocation10 + $0x90] sm:$0xff] %v2055
          %2088 = vst [vmem:[#allocation10 + $0x98] sm:$0xff] %v2056
          %2089 = vst [vmem:[#allocation10 + $0xa0] sm:$0xff] %v2057
          %2090 = vst [vmem:[#allocation10 + $0xa8] sm:$0xff] %v2058
          %2091 = vst [vmem:[#allocation10 + $0xb0] sm:$0xff] %v2059
          %2092 = vst [vmem:[#allocation10 + $0xb8] sm:$0xff] %v2060
          %2093 = vst [vmem:[#allocation10 + $0xc0] sm:$0xff] %v2061
          %2094 = vst [vmem:[#allocation10 + $0xc8] sm:$0xff] %v2062
          %2095 = vst [vmem:[#allocation10 + $0xd0] sm:$0xff] %v2063
          %2096 = vst [vmem:[#allocation10 + $0xd8] sm:$0xff] %v2064
          %2097 = vst [vmem:[#allocation10 + $0xe0] sm:$0xff] %v2065
          %2098 = vst [vmem:[#allocation10 + $0xe8] sm:$0xff] %v2066
          %2099 = vst [vmem:[#allocation10 + $0xf0] sm:$0xff] %v2067
          %2100 = vst [vmem:[#allocation10 + $0xf8] sm:$0xff] %v2068
        $region56: #{tpu_custom_call.1} parent=31 // pred_fallthru
          _
        %p2101 = scmp.eq.s32.totalorder %s25, 3
        %p2102 = pnand %p2101, %p258
        %p2103 = pneg %p2102
        // Predicated region
        $region57: #{tpu_custom_call.1} parent=31 // pred_check
          _
        $region58: #{tpu_custom_call.1} parent=31 // pred_check_branch
          %2105 = sbr.rel (%p2102) target = $region60
        $region59: #{tpu_custom_call.1} parent=31 // pred_region
          %v2106 = vld [vmem:[#allocation10] sm:$0xff]
          %v2107 = vld [vmem:[#allocation10 + $0x8] sm:$0xff]
          %v2108 = vld [vmem:[#allocation10 + $0x10] sm:$0xff]
          %v2109 = vld [vmem:[#allocation10 + $0x18] sm:$0xff]
          %v2110 = vld [vmem:[#allocation10 + $0x20] sm:$0xff]
          %v2111 = vld [vmem:[#allocation10 + $0x28] sm:$0xff]
          %v2112 = vld [vmem:[#allocation10 + $0x30] sm:$0xff]
          %v2113 = vld [vmem:[#allocation10 + $0x38] sm:$0xff]
          %v2114 = vld [vmem:[#allocation10 + $0x40] sm:$0xff]
          %v2115 = vld [vmem:[#allocation10 + $0x48] sm:$0xff]
          %v2116 = vld [vmem:[#allocation10 + $0x50] sm:$0xff]
          %v2117 = vld [vmem:[#allocation10 + $0x58] sm:$0xff]
          %v2118 = vld [vmem:[#allocation10 + $0x60] sm:$0xff]
          %v2119 = vld [vmem:[#allocation10 + $0x68] sm:$0xff]
          %v2120 = vld [vmem:[#allocation10 + $0x70] sm:$0xff]
          %v2121 = vld [vmem:[#allocation10 + $0x78] sm:$0xff]
          %v2122 = vld [vmem:[#allocation10 + $0x80] sm:$0xff]
          %v2123 = vld [vmem:[#allocation10 + $0x88] sm:$0xff]
          %v2124 = vld [vmem:[#allocation10 + $0x90] sm:$0xff]
          %v2125 = vld [vmem:[#allocation10 + $0x98] sm:$0xff]
          %v2126 = vld [vmem:[#allocation10 + $0xa0] sm:$0xff]
          %v2127 = vld [vmem:[#allocation10 + $0xa8] sm:$0xff]
          %v2128 = vld [vmem:[#allocation10 + $0xb0] sm:$0xff]
          %v2129 = vld [vmem:[#allocation10 + $0xb8] sm:$0xff]
          %v2130 = vld [vmem:[#allocation10 + $0xc0] sm:$0xff]
          %v2131 = vld [vmem:[#allocation10 + $0xc8] sm:$0xff]
          %v2132 = vld [vmem:[#allocation10 + $0xd0] sm:$0xff]
          %v2133 = vld [vmem:[#allocation10 + $0xd8] sm:$0xff]
          %v2134 = vld [vmem:[#allocation10 + $0xe0] sm:$0xff]
          %v2135 = vld [vmem:[#allocation10 + $0xe8] sm:$0xff]
          %v2136 = vld [vmem:[#allocation10 + $0xf0] sm:$0xff]
          %v2137 = vld [vmem:[#allocation10 + $0xf8] sm:$0xff]
          %v2138 = vmax.f32 %v2106, 0.0
          %v2139 = vmax.f32 %v2107, 0.0
          %v2140 = vmax.f32 %v2108, 0.0
          %v2141 = vmax.f32 %v2109, 0.0
          %v2142 = vmax.f32 %v2110, 0.0
          %v2143 = vmax.f32 %v2111, 0.0
          %v2144 = vmax.f32 %v2112, 0.0
          %v2145 = vmax.f32 %v2113, 0.0
          %v2146 = vmax.f32 %v2114, 0.0
          %v2147 = vmax.f32 %v2115, 0.0
          %v2148 = vmax.f32 %v2116, 0.0
          %v2149 = vmax.f32 %v2117, 0.0
          %v2150 = vmax.f32 %v2118, 0.0
          %v2151 = vmax.f32 %v2119, 0.0
          %v2152 = vmax.f32 %v2120, 0.0
          %v2153 = vmax.f32 %v2121, 0.0
          %v2154 = vmax.f32 %v2122, 0.0
          %v2155 = vmax.f32 %v2123, 0.0
          %v2156 = vmax.f32 %v2124, 0.0
          %v2157 = vmax.f32 %v2125, 0.0
          %v2158 = vmax.f32 %v2126, 0.0
          %v2159 = vmax.f32 %v2127, 0.0
          %v2160 = vmax.f32 %v2128, 0.0
          %v2161 = vmax.f32 %v2129, 0.0
          %v2162 = vmax.f32 %v2130, 0.0
          %v2163 = vmax.f32 %v2131, 0.0
          %v2164 = vmax.f32 %v2132, 0.0
          %v2165 = vmax.f32 %v2133, 0.0
          %v2166 = vmax.f32 %v2134, 0.0
          %v2167 = vmax.f32 %v2135, 0.0
          %v2168 = vmax.f32 %v2136, 0.0
          %v2169 = vmax.f32 %v2137, 0.0
          %2170 = vst [vmem:[#allocation10] sm:$0xff] %v2138
          %2171 = vst [vmem:[#allocation10 + $0x8] sm:$0xff] %v2139
          %2172 = vst [vmem:[#allocation10 + $0x10] sm:$0xff] %v2140
          %2173 = vst [vmem:[#allocation10 + $0x18] sm:$0xff] %v2141
          %2174 = vst [vmem:[#allocation10 + $0x20] sm:$0xff] %v2142
          %2175 = vst [vmem:[#allocation10 + $0x28] sm:$0xff] %v2143
          %2176 = vst [vmem:[#allocation10 + $0x30] sm:$0xff] %v2144
          %2177 = vst [vmem:[#allocation10 + $0x38] sm:$0xff] %v2145
          %2178 = vst [vmem:[#allocation10 + $0x40] sm:$0xff] %v2146
          %2179 = vst [vmem:[#allocation10 + $0x48] sm:$0xff] %v2147
          %2180 = vst [vmem:[#allocation10 + $0x50] sm:$0xff] %v2148
          %2181 = vst [vmem:[#allocation10 + $0x58] sm:$0xff] %v2149
          %2182 = vst [vmem:[#allocation10 + $0x60] sm:$0xff] %v2150
          %2183 = vst [vmem:[#allocation10 + $0x68] sm:$0xff] %v2151
          %2184 = vst [vmem:[#allocation10 + $0x70] sm:$0xff] %v2152
          %2185 = vst [vmem:[#allocation10 + $0x78] sm:$0xff] %v2153
          %2186 = vst [vmem:[#allocation10 + $0x80] sm:$0xff] %v2154
          %2187 = vst [vmem:[#allocation10 + $0x88] sm:$0xff] %v2155
          %2188 = vst [vmem:[#allocation10 + $0x90] sm:$0xff] %v2156
          %2189 = vst [vmem:[#allocation10 + $0x98] sm:$0xff] %v2157
          %2190 = vst [vmem:[#allocation10 + $0xa0] sm:$0xff] %v2158
          %2191 = vst [vmem:[#allocation10 + $0xa8] sm:$0xff] %v2159
          %2192 = vst [vmem:[#allocation10 + $0xb0] sm:$0xff] %v2160
          %2193 = vst [vmem:[#allocation10 + $0xb8] sm:$0xff] %v2161
          %2194 = vst [vmem:[#allocation10 + $0xc0] sm:$0xff] %v2162
          %2195 = vst [vmem:[#allocation10 + $0xc8] sm:$0xff] %v2163
          %2196 = vst [vmem:[#allocation10 + $0xd0] sm:$0xff] %v2164
          %2197 = vst [vmem:[#allocation10 + $0xd8] sm:$0xff] %v2165
          %2198 = vst [vmem:[#allocation10 + $0xe0] sm:$0xff] %v2166
          %2199 = vst [vmem:[#allocation10 + $0xe8] sm:$0xff] %v2167
          %2200 = vst [vmem:[#allocation10 + $0xf0] sm:$0xff] %v2168
          %2201 = vst [vmem:[#allocation10 + $0xf8] sm:$0xff] %v2169
        $region60: #{tpu_custom_call.1} parent=31 // pred_fallthru
          _
        // Predicated region
        $region61: #{tpu_custom_call.1} parent=31 // pred_check
          %p2202 = pneg %p133
        $region62: #{tpu_custom_call.1} parent=31 // pred_check_branch
          %2204 = sbr.rel (%p2202) target = $region64
        $region63: #{tpu_custom_call.1} parent=31 // pred_region
          %s2205 = smul.u32 32, %s24
          %2207 = vsyncadd [#allocation6], 0
          %s2208 = smul.addr %s2205, 8
          %s2209 = scalar_lea.hbm %s3, %s2208
          %s2210 = sshll.u32 [#allocation10], 4
          %s2211 = int_to_ptr.vmem [resolvable:$true] %s2210
          %s2212 = sshll.u32 %s2209, 4
          %s2213 = int_to_ptr.hbm [resolvable:$true] %s2212
          %2218 = dma.vmem_to_hbm [thread:$0]  %s2211, 4096, %s2213, [#allocation6], 128, 128, 8
        $region64: #{tpu_custom_call.1} parent=31 // pred_fallthru
          _
        // Predicated region
        $region65: #{tpu_custom_call.1} parent=31 // pred_check
          %p2219 = pneg %p133
        $region66: #{tpu_custom_call.1} parent=31 // pred_check_branch
          %2221 = sbr.rel (%p2219) target = $region68
        $region67: #{tpu_custom_call.1} parent=31 // pred_region
          %2223 = dma.done [#allocation6], 4096
        $region68: #{tpu_custom_call.1} parent=31 // pred_fallthru
          _
      $region32: #{tpu_custom_call.1} parent=5 // pred_fallthru
        _
      %p2224 = scmp.le.s32.totalorder 2, %s14
      // Predicated region
      $region69: #{tpu_custom_call.1} parent=5 // pred_check
        %p2225 = pneg %p2224
      $region70: #{tpu_custom_call.1} parent=5 // pred_check_branch
        %2227 = sbr.rel (%p2225) target = $region72
      $region71: #{tpu_custom_call.1} parent=5 // pred_region
        %s2228 = ssub.s32 %s14, 2
      $region72: #{tpu_custom_call.1} parent=5 // pred_fallthru
        _
    $region6: #{tpu_custom_call.1} parent=1 // loop_footer
      %s18 = sadd.s32 1, %s14
    $region7: #{tpu_custom_call.1} parent=1 // loop_footer_branch
      %13 = sbr.rel target = $region3
    $region8: #{tpu_custom_call.1} parent=1 // loop_exit
      _
    %2229 = vsyncpa [#allocation5], 1
    %s2230 = scalar_lea.sflag [#allocation5], 1
    %2231 = vsyncpa %s2230, 1
    %2232 = vsyncpa [#allocation8], 1
    %2233 = vsyncpa [#allocation6], 1
    %s2234 = scalar_lea.sflag [#allocation6], 1
    %2235 = vsyncpa %s2234, 1

</llo_original>
